<compile_context>
chip_gen: v5e
topology: v5e:2x2
jax: 0.10.0
libtpu: 0.0.40
codegen_flags: <defaults>
</compile_context>

<pallas_src>
import functools

import jax
import jax.numpy as jnp
from jax.experimental import pallas as pl
from jax.experimental.pallas import tpu as pltpu  # noqa: F401  (TPU backend)


CFG = dict(
    vocab_size=100,
    type_vocab_size=2,
    max_position=16,
    hidden=32,
    num_heads=2,
    head_dim=16,
    intermediate=64,
    num_layers=2,
    num_labels=3,
)

LANE_PAD = 128  # classifier output padded to a full lane tile (lane-dense store)


# ----------------------------------------------------------------------------
# Fused forward kernel
# ----------------------------------------------------------------------------

def _fused_bert_kernel(
    emb_ref, mask_ref, emb_ln_g_ref, emb_ln_b_ref,
    q_w_ref, q_b_ref, k_w_ref, k_b_ref, v_w_ref, v_b_ref,
    o_w_ref, o_b_ref, ln1_g_ref, ln1_b_ref,
    ffn_w1_ref, ffn_b1_ref, ffn_w2_ref, ffn_b2_ref, ln2_g_ref, ln2_b_ref,
    pool_w_ref, pool_b_ref, cls_w_ref, cls_b_ref,
    logits_ref,
    *, num_layers, num_heads, head_dim, batch, seq, eps):
    """Entire TagExtractionModel forward in one kernel invocation."""
    f32 = jnp.float32

    def layernorm(x, g, b):
        mu = jnp.mean(x, axis=-1, keepdims=True)
        xc = x - mu
        var = jnp.mean(xc * xc, axis=-1, keepdims=True)
        return xc * jax.lax.rsqrt(var + eps) * g + b

    # ---- embeddings LayerNorm (no residual / no zeros tensor) -------------
    x = layernorm(emb_ref[...], emb_ln_g_ref[...], emb_ln_b_ref[...])  # (B*S, H)

    mask = mask_ref[...]                   # (B, 1, S) additive bias (0 / -1e9)
    q_w = q_w_ref[...]; q_b = q_b_ref[...]     # (L, nH, H, dH) / (L, nH, 1, dH)
    k_w = k_w_ref[...]; k_b = k_b_ref[...]
    v_w = v_w_ref[...]; v_b = v_b_ref[...]
    o_w = o_w_ref[...]; o_b = o_b_ref[...]     # (L, nH, dH, H) / (L, 1, H)
    ln1_g = ln1_g_ref[...]; ln1_b = ln1_b_ref[...]
    f1_w = ffn_w1_ref[...]; f1_b = ffn_b1_ref[...]
    f2_w = ffn_w2_ref[...]; f2_b = ffn_b2_ref[...]
    ln2_g = ln2_g_ref[...]; ln2_b = ln2_b_ref[...]

    scale = 1.0 / (head_dim ** 0.5)

    for l in range(num_layers):
        # ---- multi-head self-attention (all batches/heads, fully unrolled) --
        attn = None
        for h in range(num_heads):
            qh = jnp.dot(x, q_w[l, h], preferred_element_type=f32) + q_b[l, h]
            kh = jnp.dot(x, k_w[l, h], preferred_element_type=f32) + k_b[l, h]
            vh = jnp.dot(x, v_w[l, h], preferred_element_type=f32) + v_b[l, h]

            ctx_rows = []
            for b in range(batch):
                r0, r1 = b * seq, (b + 1) * seq
                qbh, kbh, vbh = qh[r0:r1], kh[r0:r1], vh[r0:r1]   # (S, dH)
                # q @ k^T via dot_general on the last axes (no explicit transpose)
                s = jax.lax.dot_general(
                    qbh, kbh, (((1,), (1,)), ((), ())),
                    preferred_element_type=f32) * scale + mask[b]  # (S, S)
                s = s - jnp.max(s, axis=-1, keepdims=True)
                p = jnp.exp(s)
                p = p * pl.reciprocal(jnp.sum(p, axis=-1, keepdims=True),
                                      approx=True)
                ctx_rows.append(jnp.dot(p, vbh, preferred_element_type=f32))
            ctx_h = jnp.concatenate(ctx_rows, axis=0)              # (B*S, dH)
            contrib = jnp.dot(ctx_h, o_w[l, h], preferred_element_type=f32)
            attn = contrib if attn is None else attn + contrib
        attn = attn + o_b[l]
        x = layernorm(x + attn, ln1_g[l], ln1_b[l])

        # ---- feed-forward -------------------------------------------------
        # TODO(synk): HF BERT default is exact erf GELU; tanh approximation used.
        hmid = jnp.dot(x, f1_w[l], preferred_element_type=f32) + f1_b[l]
        hmid = jax.nn.gelu(hmid, approximate=True)
        ffn = jnp.dot(hmid, f2_w[l], preferred_element_type=f32) + f2_b[l]
        x = layernorm(x + ffn, ln2_g[l], ln2_b[l])

    # ---- pooler (tanh dense) + classifier into a lane-dense padded slab ----
    pooled = jnp.tanh(jnp.dot(x, pool_w_ref[...], preferred_element_type=f32)
                      + pool_b_ref[...])                           # (B*S, H)
    logits_all = (jnp.dot(pooled, cls_w_ref[...], preferred_element_type=f32)
                  + cls_b_ref[...])                                # (B*S, 128)
    for b in range(batch):     # keep only the [CLS] row of each sequence
        logits_ref[b:b + 1, :] = logits_all[b * seq:b * seq + 1, :]


# ----------------------------------------------------------------------------
# Parameter init (same semantics as before) and kernel-layout repacking
# ----------------------------------------------------------------------------

def init_params(key, cfg):
    # TODO(synk): BertModel.from_pretrained checkpoint loading is replaced by a
    # deterministic random init (no files / network allowed in-script).
    H, I = cfg["hidden"], cfg["intermediate"]
    keys = iter(jax.random.split(key, 64))
    scale = 0.02

    def w(shape):
        return scale * jax.random.normal(next(keys), shape, jnp.float32)

    params = {
        "word_emb": w((cfg["vocab_size"], H)),
        "pos_emb": w((cfg["max_position"], H)),
        "type_emb": w((cfg["type_vocab_size"], H)),
        "emb_ln_g": jnp.ones((H,), jnp.float32),
        "emb_ln_b": jnp.zeros((H,), jnp.float32),
        "layers": [],
        "pool_w": w((H, H)),
        "pool_b": jnp.zeros((H,), jnp.float32),
        "cls_w": w((H, cfg["num_labels"])),
        "cls_b": jnp.zeros((cfg["num_labels"],), jnp.float32),
    }
    for _ in range(cfg["num_layers"]):
        params["layers"].append({
            "q_w": w((H, H)), "q_b": jnp.zeros((H,), jnp.float32),
            "k_w": w((H, H)), "k_b": jnp.zeros((H,), jnp.float32),
            "v_w": w((H, H)), "v_b": jnp.zeros((H,), jnp.float32),
            "o_w": w((H, H)), "o_b": jnp.zeros((H,), jnp.float32),
            "ln1_g": jnp.ones((H,), jnp.float32),
            "ln1_b": jnp.zeros((H,), jnp.float32),
            "ffn_w1": w((H, I)), "ffn_b1": jnp.zeros((I,), jnp.float32),
            "ffn_w2": w((I, H)), "ffn_b2": jnp.zeros((H,), jnp.float32),
            "ln2_g": jnp.ones((H,), jnp.float32),
            "ln2_b": jnp.zeros((H,), jnp.float32),
        })
    return params


def prepare_kernel_params(params, cfg):
    """One-time repack into stacked per-layer / per-head weight blocks."""
    H = cfg["hidden"]
    nH, dH = cfg["num_heads"], cfg["head_dim"]
    NLAB = cfg["num_labels"]
    layers = params["layers"]

    def heads_cols(w):   # (H, H) -> (nH, H, dH): split output features per head
        return jnp.stack([w[:, h * dH:(h + 1) * dH] for h in range(nH)])

    def heads_rows(w):   # (H, H) -> (nH, dH, H): split input features per head
        return jnp.stack([w[h * dH:(h + 1) * dH, :] for h in range(nH)])

    def heads_bias(b):   # (H,) -> (nH, 1, dH)
        return jnp.stack([b[h * dH:(h + 1) * dH][None, :] for h in range(nH)])

    kp = dict(
        word_emb=params["word_emb"],
        pos_emb=params["pos_emb"],
        type_emb=params["type_emb"],
        emb_ln_g=params["emb_ln_g"][None, :],
        emb_ln_b=params["emb_ln_b"][None, :],
        q_w=jnp.stack([heads_cols(l["q_w"]) for l in layers]),
        q_b=jnp.stack([heads_bias(l["q_b"]) for l in layers]),
        k_w=jnp.stack([heads_cols(l["k_w"]) for l in layers]),
        k_b=jnp.stack([heads_bias(l["k_b"]) for l in layers]),
        v_w=jnp.stack([heads_cols(l["v_w"]) for l in layers]),
        v_b=jnp.stack([heads_bias(l["v_b"]) for l in layers]),
        o_w=jnp.stack([heads_rows(l["o_w"]) for l in layers]),
        o_b=jnp.stack([l["o_b"][None, :] for l in layers]),
        ln1_g=jnp.stack([l["ln1_g"][None, :] for l in layers]),
        ln1_b=jnp.stack([l["ln1_b"][None, :] for l in layers]),
        ffn_w1=jnp.stack([l["ffn_w1"] for l in layers]),
        ffn_b1=jnp.stack([l["ffn_b1"][None, :] for l in layers]),
        ffn_w2=jnp.stack([l["ffn_w2"] for l in layers]),
        ffn_b2=jnp.stack([l["ffn_b2"][None, :] for l in layers]),
        ln2_g=jnp.stack([l["ln2_g"][None, :] for l in layers]),
        ln2_b=jnp.stack([l["ln2_b"][None, :] for l in layers]),
        pool_w=params["pool_w"],
        pool_b=params["pool_b"][None, :],
        # Pad classifier to 128 output lanes (lane-dense store); slice later.
        cls_w=jnp.zeros((H, LANE_PAD), jnp.float32).at[:, :NLAB].set(
            params["cls_w"]),
        cls_b=jnp.zeros((1, LANE_PAD), jnp.float32).at[0, :NLAB].set(
            params["cls_b"]),
    )
    return kp


# ----------------------------------------------------------------------------
# Forward: embedding gather (glue) + one fused pallas_call
# ----------------------------------------------------------------------------

def tag_extraction_forward(kp, input_ids, attention_mask, cfg):
    B, S = input_ids.shape
    H = cfg["hidden"]
    NLAB = cfg["num_labels"]

    word = jnp.take(kp["word_emb"], input_ids, axis=0)               # (B,S,H)
    pos = kp["pos_emb"][:S][None, :, :]                              # (1,S,H)
    typ = kp["type_emb"][0][None, None, :]                           # (1,1,H)
    emb = (word + pos + typ).reshape(B * S, H).astype(jnp.float32)

    # Additive attention-mask bias: 0 where attended, -1e9 where masked.
    mask_bias = ((1.0 - attention_mask.astype(jnp.float32)) * -1e9)[:, None, :]

    kernel = functools.partial(
        _fused_bert_kernel,
        num_layers=cfg["num_layers"], num_heads=cfg["num_heads"],
        head_dim=cfg["head_dim"], batch=B, seq=S, eps=1e-12)

    # Single grid-less pallas_call: every operand is a whole-array VMEM block.
    logits_pad = pl.pallas_call(
        kernel,
        out_shape=jax.ShapeDtypeStruct((B, LANE_PAD), jnp.float32),
    )(emb, mask_bias,
      kp["emb_ln_g"], kp["emb_ln_b"],
      kp["q_w"], kp["q_b"], kp["k_w"], kp["k_b"], kp["v_w"], kp["v_b"],
      kp["o_w"], kp["o_b"], kp["ln1_g"], kp["ln1_b"],
      kp["ffn_w1"], kp["ffn_b1"], kp["ffn_w2"], kp["ffn_b2"],
      kp["ln2_g"], kp["ln2_b"],
      kp["pool_w"], kp["pool_b"], kp["cls_w"], kp["cls_b"])

    return logits_pad[:, :NLAB]


if __name__ == "__main__":
    cfg = CFG
    B, S = 2, 8

    key = jax.random.PRNGKey(0)
    k_params, k_ids = jax.random.split(key)

    params = init_params(k_params, cfg)
    kparams = prepare_kernel_params(params, cfg)

    input_ids = jax.random.randint(k_ids, (B, S), 0, cfg["vocab_size"],
                                   dtype=jnp.int32)
    attention_mask = jnp.array(
        [[1, 1, 1, 1, 1, 1, 1, 1],
         [1, 1, 1, 1, 1, 0, 0, 0]], dtype=jnp.int32)

    forward = jax.jit(
        lambda kp, ids, mask: tag_extraction_forward(kp, ids, mask, cfg))

    logits = forward(kparams, input_ids, attention_mask)
    logits = jax.block_until_ready(logits)

    assert logits.shape == (B, cfg["num_labels"])
    assert logits.dtype == jnp.float32
    assert bool(jnp.all(jnp.isfinite(logits)))
    print("KERNEL_OK")
</pallas_src>

<mosaic_0001>
module attributes {stable_mosaic.version = 11 : i64} {
  func.func @_fused_bert_kernel(%arg0: memref<16x32xf32, #tpu.memory_space<vmem>>, %arg1: memref<2x1x8xf32, #tpu.memory_space<vmem>>, %arg2: memref<1x32xf32, #tpu.memory_space<vmem>>, %arg3: memref<1x32xf32, #tpu.memory_space<vmem>>, %arg4: memref<2x2x32x16xf32, #tpu.memory_space<vmem>>, %arg5: memref<2x2x1x16xf32, #tpu.memory_space<vmem>>, %arg6: memref<2x2x32x16xf32, #tpu.memory_space<vmem>>, %arg7: memref<2x2x1x16xf32, #tpu.memory_space<vmem>>, %arg8: memref<2x2x32x16xf32, #tpu.memory_space<vmem>>, %arg9: memref<2x2x1x16xf32, #tpu.memory_space<vmem>>, %arg10: memref<2x2x16x32xf32, #tpu.memory_space<vmem>>, %arg11: memref<2x1x32xf32, #tpu.memory_space<vmem>>, %arg12: memref<2x1x32xf32, #tpu.memory_space<vmem>>, %arg13: memref<2x1x32xf32, #tpu.memory_space<vmem>>, %arg14: memref<2x32x64xf32, #tpu.memory_space<vmem>>, %arg15: memref<2x1x64xf32, #tpu.memory_space<vmem>>, %arg16: memref<2x64x32xf32, #tpu.memory_space<vmem>>, %arg17: memref<2x1x32xf32, #tpu.memory_space<vmem>>, %arg18: memref<2x1x32xf32, #tpu.memory_space<vmem>>, %arg19: memref<2x1x32xf32, #tpu.memory_space<vmem>>, %arg20: memref<32x32xf32, #tpu.memory_space<vmem>>, %arg21: memref<1x32xf32, #tpu.memory_space<vmem>>, %arg22: memref<32x128xf32, #tpu.memory_space<vmem>>, %arg23: memref<1x128xf32, #tpu.memory_space<vmem>>, %arg24: memref<2x128xf32, #tpu.memory_space<vmem>>) attributes {dimension_semantics = [], scalar_prefetch = 0 : i64, scratch_operands = 0 : i64, tpu.core_type = #tpu.core_type<tc>} {
    %c0 = arith.constant 0 : index
    %c0_0 = arith.constant 0 : index
    %0 = vector.load %arg0[%c0, %c0_0] : memref<16x32xf32, #tpu.memory_space<vmem>>, vector<16x32xf32>
    %c0_1 = arith.constant 0 : index
    %c0_2 = arith.constant 0 : index
    %1 = vector.load %arg2[%c0_1, %c0_2] : memref<1x32xf32, #tpu.memory_space<vmem>>, vector<1x32xf32>
    %c0_3 = arith.constant 0 : index
    %c0_4 = arith.constant 0 : index
    %2 = vector.load %arg3[%c0_3, %c0_4] : memref<1x32xf32, #tpu.memory_space<vmem>>, vector<1x32xf32>
    %cst = arith.constant dense<0.000000e+00> : vector<16xf32>
    %3 = vector.multi_reduction <add>, %0, %cst [1] : vector<16x32xf32> to vector<16xf32>
    %4 = vector.shape_cast %3 : vector<16xf32> to vector<16x1xf32>
    %cst_5 = arith.constant 3.200000e+01 : f32
    %5 = vector.broadcast %cst_5 : f32 to vector<16x1xf32>
    %6 = arith.divf %4, %5 : vector<16x1xf32>
    %7 = vector.broadcast %6 : vector<16x1xf32> to vector<16x32xf32>
    %8 = arith.subf %0, %7 : vector<16x32xf32>
    %9 = arith.mulf %8, %8 : vector<16x32xf32>
    %cst_6 = arith.constant dense<0.000000e+00> : vector<16xf32>
    %10 = vector.multi_reduction <add>, %9, %cst_6 [1] : vector<16x32xf32> to vector<16xf32>
    %11 = vector.shape_cast %10 : vector<16xf32> to vector<16x1xf32>
    %cst_7 = arith.constant 3.200000e+01 : f32
    %12 = vector.broadcast %cst_7 : f32 to vector<16x1xf32>
    %13 = arith.divf %11, %12 : vector<16x1xf32>
    %cst_8 = arith.constant 9.99999996E-13 : f32
    %14 = vector.broadcast %cst_8 : f32 to vector<16x1xf32>
    %15 = arith.addf %13, %14 : vector<16x1xf32>
    %16 = math.rsqrt %15 : vector<16x1xf32>
    %17 = vector.broadcast %16 : vector<16x1xf32> to vector<16x32xf32>
    %18 = arith.mulf %8, %17 : vector<16x32xf32>
    %19 = vector.broadcast %1 : vector<1x32xf32> to vector<16x32xf32>
    %20 = arith.mulf %18, %19 : vector<16x32xf32>
    %21 = vector.broadcast %2 : vector<1x32xf32> to vector<16x32xf32>
    %22 = arith.addf %20, %21 : vector<16x32xf32>
    %c0_9 = arith.constant 0 : index
    %c0_10 = arith.constant 0 : index
    %c0_11 = arith.constant 0 : index
    %23 = vector.load %arg1[%c0_9, %c0_10, %c0_11] : memref<2x1x8xf32, #tpu.memory_space<vmem>>, vector<2x1x8xf32>
    %c0_12 = arith.constant 0 : index
    %c0_13 = arith.constant 0 : index
    %c0_14 = arith.constant 0 : index
    %c0_15 = arith.constant 0 : index
    %24 = vector.load %arg4[%c0_12, %c0_13, %c0_14, %c0_15] : memref<2x2x32x16xf32, #tpu.memory_space<vmem>>, vector<2x2x32x16xf32>
    %c0_16 = arith.constant 0 : index
    %c0_17 = arith.constant 0 : index
    %c0_18 = arith.constant 0 : index
    %c0_19 = arith.constant 0 : index
    %25 = vector.load %arg5[%c0_16, %c0_17, %c0_18, %c0_19] : memref<2x2x1x16xf32, #tpu.memory_space<vmem>>, vector<2x2x1x16xf32>
    %c0_20 = arith.constant 0 : index
    %c0_21 = arith.constant 0 : index
    %c0_22 = arith.constant 0 : index
    %c0_23 = arith.constant 0 : index
    %26 = vector.load %arg6[%c0_20, %c0_21, %c0_22, %c0_23] : memref<2x2x32x16xf32, #tpu.memory_space<vmem>>, vector<2x2x32x16xf32>
    %c0_24 = arith.constant 0 : index
    %c0_25 = arith.constant 0 : index
    %c0_26 = arith.constant 0 : index
    %c0_27 = arith.constant 0 : index
    %27 = vector.load %arg7[%c0_24, %c0_25, %c0_26, %c0_27] : memref<2x2x1x16xf32, #tpu.memory_space<vmem>>, vector<2x2x1x16xf32>
    %c0_28 = arith.constant 0 : index
    %c0_29 = arith.constant 0 : index
    %c0_30 = arith.constant 0 : index
    %c0_31 = arith.constant 0 : index
    %28 = vector.load %arg8[%c0_28, %c0_29, %c0_30, %c0_31] : memref<2x2x32x16xf32, #tpu.memory_space<vmem>>, vector<2x2x32x16xf32>
    %c0_32 = arith.constant 0 : index
    %c0_33 = arith.constant 0 : index
    %c0_34 = arith.constant 0 : index
    %c0_35 = arith.constant 0 : index
    %29 = vector.load %arg9[%c0_32, %c0_33, %c0_34, %c0_35] : memref<2x2x1x16xf32, #tpu.memory_space<vmem>>, vector<2x2x1x16xf32>
    %c0_36 = arith.constant 0 : index
    %c0_37 = arith.constant 0 : index
    %c0_38 = arith.constant 0 : index
    %c0_39 = arith.constant 0 : index
    %30 = vector.load %arg10[%c0_36, %c0_37, %c0_38, %c0_39] : memref<2x2x16x32xf32, #tpu.memory_space<vmem>>, vector<2x2x16x32xf32>
    %c0_40 = arith.constant 0 : index
    %c0_41 = arith.constant 0 : index
    %c0_42 = arith.constant 0 : index
    %31 = vector.load %arg11[%c0_40, %c0_41, %c0_42] : memref<2x1x32xf32, #tpu.memory_space<vmem>>, vector<2x1x32xf32>
    %c0_43 = arith.constant 0 : index
    %c0_44 = arith.constant 0 : index
    %c0_45 = arith.constant 0 : index
    %32 = vector.load %arg12[%c0_43, %c0_44, %c0_45] : memref<2x1x32xf32, #tpu.memory_space<vmem>>, vector<2x1x32xf32>
    %c0_46 = arith.constant 0 : index
    %c0_47 = arith.constant 0 : index
    %c0_48 = arith.constant 0 : index
    %33 = vector.load %arg13[%c0_46, %c0_47, %c0_48] : memref<2x1x32xf32, #tpu.memory_space<vmem>>, vector<2x1x32xf32>
    %c0_49 = arith.constant 0 : index
    %c0_50 = arith.constant 0 : index
    %c0_51 = arith.constant 0 : index
    %34 = vector.load %arg14[%c0_49, %c0_50, %c0_51] : memref<2x32x64xf32, #tpu.memory_space<vmem>>, vector<2x32x64xf32>
    %c0_52 = arith.constant 0 : index
    %c0_53 = arith.constant 0 : index
    %c0_54 = arith.constant 0 : index
    %35 = vector.load %arg15[%c0_52, %c0_53, %c0_54] : memref<2x1x64xf32, #tpu.memory_space<vmem>>, vector<2x1x64xf32>
    %c0_55 = arith.constant 0 : index
    %c0_56 = arith.constant 0 : index
    %c0_57 = arith.constant 0 : index
    %36 = vector.load %arg16[%c0_55, %c0_56, %c0_57] : memref<2x64x32xf32, #tpu.memory_space<vmem>>, vector<2x64x32xf32>
    %c0_58 = arith.constant 0 : index
    %c0_59 = arith.constant 0 : index
    %c0_60 = arith.constant 0 : index
    %37 = vector.load %arg17[%c0_58, %c0_59, %c0_60] : memref<2x1x32xf32, #tpu.memory_space<vmem>>, vector<2x1x32xf32>
    %c0_61 = arith.constant 0 : index
    %c0_62 = arith.constant 0 : index
    %c0_63 = arith.constant 0 : index
    %38 = vector.load %arg18[%c0_61, %c0_62, %c0_63] : memref<2x1x32xf32, #tpu.memory_space<vmem>>, vector<2x1x32xf32>
    %c0_64 = arith.constant 0 : index
    %c0_65 = arith.constant 0 : index
    %c0_66 = arith.constant 0 : index
    %39 = vector.load %arg19[%c0_64, %c0_65, %c0_66] : memref<2x1x32xf32, #tpu.memory_space<vmem>>, vector<2x1x32xf32>
    %40 = vector.extract_strided_slice %24 {offsets = [0, 0, 0, 0], sizes = [1, 1, 32, 16], strides = [1, 1, 1, 1]} : vector<2x2x32x16xf32> to vector<1x1x32x16xf32>
    %41 = vector.shape_cast %40 : vector<1x1x32x16xf32> to vector<32x16xf32>
    %cst_67 = arith.constant dense<0.000000e+00> : vector<16x16xf32>
    %42 = tpu.matmul %22, %41, %cst_67 {dimension_numbers = #tpu.dot_dimension_numbers<[1], [0], [0], [1], [0, 0, 1, 1], [], []>} : vector<16x32xf32>, vector<32x16xf32>, vector<16x16xf32> -> vector<16x16xf32>
    %43 = vector.extract_strided_slice %25 {offsets = [0, 0, 0, 0], sizes = [1, 1, 1, 16], strides = [1, 1, 1, 1]} : vector<2x2x1x16xf32> to vector<1x1x1x16xf32>
    %44 = vector.shape_cast %43 : vector<1x1x1x16xf32> to vector<1x16xf32>
    %45 = vector.broadcast %44 : vector<1x16xf32> to vector<16x16xf32>
    %46 = arith.addf %42, %45 : vector<16x16xf32>
    %47 = vector.extract_strided_slice %26 {offsets = [0, 0, 0, 0], sizes = [1, 1, 32, 16], strides = [1, 1, 1, 1]} : vector<2x2x32x16xf32> to vector<1x1x32x16xf32>
    %48 = vector.shape_cast %47 : vector<1x1x32x16xf32> to vector<32x16xf32>
    %cst_68 = arith.constant dense<0.000000e+00> : vector<16x16xf32>
    %49 = tpu.matmul %22, %48, %cst_68 {dimension_numbers = #tpu.dot_dimension_numbers<[1], [0], [0], [1], [0, 0, 1, 1], [], []>} : vector<16x32xf32>, vector<32x16xf32>, vector<16x16xf32> -> vector<16x16xf32>
    %50 = vector.extract_strided_slice %27 {offsets = [0, 0, 0, 0], sizes = [1, 1, 1, 16], strides = [1, 1, 1, 1]} : vector<2x2x1x16xf32> to vector<1x1x1x16xf32>
    %51 = vector.shape_cast %50 : vector<1x1x1x16xf32> to vector<1x16xf32>
    %52 = vector.broadcast %51 : vector<1x16xf32> to vector<16x16xf32>
    %53 = arith.addf %49, %52 : vector<16x16xf32>
    %54 = vector.extract_strided_slice %28 {offsets = [0, 0, 0, 0], sizes = [1, 1, 32, 16], strides = [1, 1, 1, 1]} : vector<2x2x32x16xf32> to vector<1x1x32x16xf32>
    %55 = vector.shape_cast %54 : vector<1x1x32x16xf32> to vector<32x16xf32>
    %cst_69 = arith.constant dense<0.000000e+00> : vector<16x16xf32>
    %56 = tpu.matmul %22, %55, %cst_69 {dimension_numbers = #tpu.dot_dimension_numbers<[1], [0], [0], [1], [0, 0, 1, 1], [], []>} : vector<16x32xf32>, vector<32x16xf32>, vector<16x16xf32> -> vector<16x16xf32>
    %57 = vector.extract_strided_slice %29 {offsets = [0, 0, 0, 0], sizes = [1, 1, 1, 16], strides = [1, 1, 1, 1]} : vector<2x2x1x16xf32> to vector<1x1x1x16xf32>
    %58 = vector.shape_cast %57 : vector<1x1x1x16xf32> to vector<1x16xf32>
    %59 = vector.broadcast %58 : vector<1x16xf32> to vector<16x16xf32>
    %60 = arith.addf %56, %59 : vector<16x16xf32>
    %61 = vector.extract_strided_slice %46 {offsets = [0, 0], sizes = [8, 16], strides = [1, 1]} : vector<16x16xf32> to vector<8x16xf32>
    %62 = vector.extract_strided_slice %53 {offsets = [0, 0], sizes = [8, 16], strides = [1, 1]} : vector<16x16xf32> to vector<8x16xf32>
    %63 = vector.extract_strided_slice %60 {offsets = [0, 0], sizes = [8, 16], strides = [1, 1]} : vector<16x16xf32> to vector<8x16xf32>
    %cst_70 = arith.constant dense<0.000000e+00> : vector<8x8xf32>
    %64 = tpu.matmul %61, %62, %cst_70 {dimension_numbers = #tpu.dot_dimension_numbers<[1], [1], [0], [0], [0, 0, 1, 0], [], []>} : vector<8x16xf32>, vector<8x16xf32>, vector<8x8xf32> -> vector<8x8xf32>
    %cst_71 = arith.constant 2.500000e-01 : f32
    %65 = vector.broadcast %cst_71 : f32 to vector<8x8xf32>
    %66 = arith.mulf %64, %65 : vector<8x8xf32>
    %67 = vector.extract_strided_slice %23 {offsets = [0, 0, 0], sizes = [1, 1, 8], strides = [1, 1, 1]} : vector<2x1x8xf32> to vector<1x1x8xf32>
    %68 = vector.shape_cast %67 : vector<1x1x8xf32> to vector<1x8xf32>
    %69 = vector.broadcast %68 : vector<1x8xf32> to vector<8x8xf32>
    %70 = arith.addf %66, %69 : vector<8x8xf32>
    %cst_72 = arith.constant dense<0xFF800000> : vector<8xf32>
    %71 = vector.multi_reduction <maximumf>, %70, %cst_72 [1] : vector<8x8xf32> to vector<8xf32>
    %72 = vector.shape_cast %71 : vector<8xf32> to vector<8x1xf32>
    %73 = vector.broadcast %72 : vector<8x1xf32> to vector<8x8xf32>
    %74 = arith.subf %70, %73 : vector<8x8xf32>
    %75 = math.exp %74 : vector<8x8xf32>
    %cst_73 = arith.constant dense<0.000000e+00> : vector<8xf32>
    %76 = vector.multi_reduction <add>, %75, %cst_73 [1] : vector<8x8xf32> to vector<8xf32>
    %77 = vector.shape_cast %76 : vector<8xf32> to vector<8x1xf32>
    %78 = tpu.reciprocal %77 {approx = true} : vector<8x1xf32> -> vector<8x1xf32>
    %79 = vector.broadcast %78 : vector<8x1xf32> to vector<8x8xf32>
    %80 = arith.mulf %75, %79 : vector<8x8xf32>
    %cst_74 = arith.constant dense<0.000000e+00> : vector<8x16xf32>
    %81 = tpu.matmul %80, %63, %cst_74 {dimension_numbers = #tpu.dot_dimension_numbers<[1], [0], [0], [1], [0, 0, 1, 1], [], []>} : vector<8x8xf32>, vector<8x16xf32>, vector<8x16xf32> -> vector<8x16xf32>
    %82 = vector.extract_strided_slice %46 {offsets = [8, 0], sizes = [8, 16], strides = [1, 1]} : vector<16x16xf32> to vector<8x16xf32>
    %83 = vector.extract_strided_slice %53 {offsets = [8, 0], sizes = [8, 16], strides = [1, 1]} : vector<16x16xf32> to vector<8x16xf32>
    %84 = vector.extract_strided_slice %60 {offsets = [8, 0], sizes = [8, 16], strides = [1, 1]} : vector<16x16xf32> to vector<8x16xf32>
    %cst_75 = arith.constant dense<0.000000e+00> : vector<8x8xf32>
    %85 = tpu.matmul %82, %83, %cst_75 {dimension_numbers = #tpu.dot_dimension_numbers<[1], [1], [0], [0], [0, 0, 1, 0], [], []>} : vector<8x16xf32>, vector<8x16xf32>, vector<8x8xf32> -> vector<8x8xf32>
    %cst_76 = arith.constant 2.500000e-01 : f32
    %86 = vector.broadcast %cst_76 : f32 to vector<8x8xf32>
    %87 = arith.mulf %85, %86 : vector<8x8xf32>
    %88 = vector.extract_strided_slice %23 {offsets = [1, 0, 0], sizes = [1, 1, 8], strides = [1, 1, 1]} : vector<2x1x8xf32> to vector<1x1x8xf32>
    %89 = vector.shape_cast %88 : vector<1x1x8xf32> to vector<1x8xf32>
    %90 = vector.broadcast %89 : vector<1x8xf32> to vector<8x8xf32>
    %91 = arith.addf %87, %90 : vector<8x8xf32>
    %cst_77 = arith.constant dense<0xFF800000> : vector<8xf32>
    %92 = vector.multi_reduction <maximumf>, %91, %cst_77 [1] : vector<8x8xf32> to vector<8xf32>
    %93 = vector.shape_cast %92 : vector<8xf32> to vector<8x1xf32>
    %94 = vector.broadcast %93 : vector<8x1xf32> to vector<8x8xf32>
    %95 = arith.subf %91, %94 : vector<8x8xf32>
    %96 = math.exp %95 : vector<8x8xf32>
    %cst_78 = arith.constant dense<0.000000e+00> : vector<8xf32>
    %97 = vector.multi_reduction <add>, %96, %cst_78 [1] : vector<8x8xf32> to vector<8xf32>
    %98 = vector.shape_cast %97 : vector<8xf32> to vector<8x1xf32>
    %99 = tpu.reciprocal %98 {approx = true} : vector<8x1xf32> -> vector<8x1xf32>
    %100 = vector.broadcast %99 : vector<8x1xf32> to vector<8x8xf32>
    %101 = arith.mulf %96, %100 : vector<8x8xf32>
    %cst_79 = arith.constant dense<0.000000e+00> : vector<8x16xf32>
    %102 = tpu.matmul %101, %84, %cst_79 {dimension_numbers = #tpu.dot_dimension_numbers<[1], [0], [0], [1], [0, 0, 1, 1], [], []>} : vector<8x8xf32>, vector<8x16xf32>, vector<8x16xf32> -> vector<8x16xf32>
    %103 = tpu.concatenate %81, %102 in 0 : vector<8x16xf32>, vector<8x16xf32> -> vector<16x16xf32>
    %104 = vector.extract_strided_slice %30 {offsets = [0, 0, 0, 0], sizes = [1, 1, 16, 32], strides = [1, 1, 1, 1]} : vector<2x2x16x32xf32> to vector<1x1x16x32xf32>
    %105 = vector.shape_cast %104 : vector<1x1x16x32xf32> to vector<16x32xf32>
    %cst_80 = arith.constant dense<0.000000e+00> : vector<16x32xf32>
    %106 = tpu.matmul %103, %105, %cst_80 {dimension_numbers = #tpu.dot_dimension_numbers<[1], [0], [0], [1], [0, 0, 1, 1], [], []>} : vector<16x16xf32>, vector<16x32xf32>, vector<16x32xf32> -> vector<16x32xf32>
    %107 = vector.extract_strided_slice %24 {offsets = [0, 1, 0, 0], sizes = [1, 1, 32, 16], strides = [1, 1, 1, 1]} : vector<2x2x32x16xf32> to vector<1x1x32x16xf32>
    %108 = vector.shape_cast %107 : vector<1x1x32x16xf32> to vector<32x16xf32>
    %cst_81 = arith.constant dense<0.000000e+00> : vector<16x16xf32>
    %109 = tpu.matmul %22, %108, %cst_81 {dimension_numbers = #tpu.dot_dimension_numbers<[1], [0], [0], [1], [0, 0, 1, 1], [], []>} : vector<16x32xf32>, vector<32x16xf32>, vector<16x16xf32> -> vector<16x16xf32>
    %110 = vector.extract_strided_slice %25 {offsets = [0, 1, 0, 0], sizes = [1, 1, 1, 16], strides = [1, 1, 1, 1]} : vector<2x2x1x16xf32> to vector<1x1x1x16xf32>
    %111 = vector.shape_cast %110 : vector<1x1x1x16xf32> to vector<1x16xf32>
    %112 = vector.broadcast %111 : vector<1x16xf32> to vector<16x16xf32>
    %113 = arith.addf %109, %112 : vector<16x16xf32>
    %114 = vector.extract_strided_slice %26 {offsets = [0, 1, 0, 0], sizes = [1, 1, 32, 16], strides = [1, 1, 1, 1]} : vector<2x2x32x16xf32> to vector<1x1x32x16xf32>
    %115 = vector.shape_cast %114 : vector<1x1x32x16xf32> to vector<32x16xf32>
    %cst_82 = arith.constant dense<0.000000e+00> : vector<16x16xf32>
    %116 = tpu.matmul %22, %115, %cst_82 {dimension_numbers = #tpu.dot_dimension_numbers<[1], [0], [0], [1], [0, 0, 1, 1], [], []>} : vector<16x32xf32>, vector<32x16xf32>, vector<16x16xf32> -> vector<16x16xf32>
    %117 = vector.extract_strided_slice %27 {offsets = [0, 1, 0, 0], sizes = [1, 1, 1, 16], strides = [1, 1, 1, 1]} : vector<2x2x1x16xf32> to vector<1x1x1x16xf32>
    %118 = vector.shape_cast %117 : vector<1x1x1x16xf32> to vector<1x16xf32>
    %119 = vector.broadcast %118 : vector<1x16xf32> to vector<16x16xf32>
    %120 = arith.addf %116, %119 : vector<16x16xf32>
    %121 = vector.extract_strided_slice %28 {offsets = [0, 1, 0, 0], sizes = [1, 1, 32, 16], strides = [1, 1, 1, 1]} : vector<2x2x32x16xf32> to vector<1x1x32x16xf32>
    %122 = vector.shape_cast %121 : vector<1x1x32x16xf32> to vector<32x16xf32>
    %cst_83 = arith.constant dense<0.000000e+00> : vector<16x16xf32>
    %123 = tpu.matmul %22, %122, %cst_83 {dimension_numbers = #tpu.dot_dimension_numbers<[1], [0], [0], [1], [0, 0, 1, 1], [], []>} : vector<16x32xf32>, vector<32x16xf32>, vector<16x16xf32> -> vector<16x16xf32>
    %124 = vector.extract_strided_slice %29 {offsets = [0, 1, 0, 0], sizes = [1, 1, 1, 16], strides = [1, 1, 1, 1]} : vector<2x2x1x16xf32> to vector<1x1x1x16xf32>
    %125 = vector.shape_cast %124 : vector<1x1x1x16xf32> to vector<1x16xf32>
    %126 = vector.broadcast %125 : vector<1x16xf32> to vector<16x16xf32>
    %127 = arith.addf %123, %126 : vector<16x16xf32>
    %128 = vector.extract_strided_slice %113 {offsets = [0, 0], sizes = [8, 16], strides = [1, 1]} : vector<16x16xf32> to vector<8x16xf32>
    %129 = vector.extract_strided_slice %120 {offsets = [0, 0], sizes = [8, 16], strides = [1, 1]} : vector<16x16xf32> to vector<8x16xf32>
    %130 = vector.extract_strided_slice %127 {offsets = [0, 0], sizes = [8, 16], strides = [1, 1]} : vector<16x16xf32> to vector<8x16xf32>
    %cst_84 = arith.constant dense<0.000000e+00> : vector<8x8xf32>
    %131 = tpu.matmul %128, %129, %cst_84 {dimension_numbers = #tpu.dot_dimension_numbers<[1], [1], [0], [0], [0, 0, 1, 0], [], []>} : vector<8x16xf32>, vector<8x16xf32>, vector<8x8xf32> -> vector<8x8xf32>
    %cst_85 = arith.constant 2.500000e-01 : f32
    %132 = vector.broadcast %cst_85 : f32 to vector<8x8xf32>
    %133 = arith.mulf %131, %132 : vector<8x8xf32>
    %134 = vector.extract_strided_slice %23 {offsets = [0, 0, 0], sizes = [1, 1, 8], strides = [1, 1, 1]} : vector<2x1x8xf32> to vector<1x1x8xf32>
    %135 = vector.shape_cast %134 : vector<1x1x8xf32> to vector<1x8xf32>
    %136 = vector.broadcast %135 : vector<1x8xf32> to vector<8x8xf32>
    %137 = arith.addf %133, %136 : vector<8x8xf32>
    %cst_86 = arith.constant dense<0xFF800000> : vector<8xf32>
    %138 = vector.multi_reduction <maximumf>, %137, %cst_86 [1] : vector<8x8xf32> to vector<8xf32>
    %139 = vector.shape_cast %138 : vector<8xf32> to vector<8x1xf32>
    %140 = vector.broadcast %139 : vector<8x1xf32> to vector<8x8xf32>
    %141 = arith.subf %137, %140 : vector<8x8xf32>
    %142 = math.exp %141 : vector<8x8xf32>
    %cst_87 = arith.constant dense<0.000000e+00> : vector<8xf32>
    %143 = vector.multi_reduction <add>, %142, %cst_87 [1] : vector<8x8xf32> to vector<8xf32>
    %144 = vector.shape_cast %143 : vector<8xf32> to vector<8x1xf32>
    %145 = tpu.reciprocal %144 {approx = true} : vector<8x1xf32> -> vector<8x1xf32>
    %146 = vector.broadcast %145 : vector<8x1xf32> to vector<8x8xf32>
    %147 = arith.mulf %142, %146 : vector<8x8xf32>
    %cst_88 = arith.constant dense<0.000000e+00> : vector<8x16xf32>
    %148 = tpu.matmul %147, %130, %cst_88 {dimension_numbers = #tpu.dot_dimension_numbers<[1], [0], [0], [1], [0, 0, 1, 1], [], []>} : vector<8x8xf32>, vector<8x16xf32>, vector<8x16xf32> -> vector<8x16xf32>
    %149 = vector.extract_strided_slice %113 {offsets = [8, 0], sizes = [8, 16], strides = [1, 1]} : vector<16x16xf32> to vector<8x16xf32>
    %150 = vector.extract_strided_slice %120 {offsets = [8, 0], sizes = [8, 16], strides = [1, 1]} : vector<16x16xf32> to vector<8x16xf32>
    %151 = vector.extract_strided_slice %127 {offsets = [8, 0], sizes = [8, 16], strides = [1, 1]} : vector<16x16xf32> to vector<8x16xf32>
    %cst_89 = arith.constant dense<0.000000e+00> : vector<8x8xf32>
    %152 = tpu.matmul %149, %150, %cst_89 {dimension_numbers = #tpu.dot_dimension_numbers<[1], [1], [0], [0], [0, 0, 1, 0], [], []>} : vector<8x16xf32>, vector<8x16xf32>, vector<8x8xf32> -> vector<8x8xf32>
    %cst_90 = arith.constant 2.500000e-01 : f32
    %153 = vector.broadcast %cst_90 : f32 to vector<8x8xf32>
    %154 = arith.mulf %152, %153 : vector<8x8xf32>
    %155 = vector.extract_strided_slice %23 {offsets = [1, 0, 0], sizes = [1, 1, 8], strides = [1, 1, 1]} : vector<2x1x8xf32> to vector<1x1x8xf32>
    %156 = vector.shape_cast %155 : vector<1x1x8xf32> to vector<1x8xf32>
    %157 = vector.broadcast %156 : vector<1x8xf32> to vector<8x8xf32>
    %158 = arith.addf %154, %157 : vector<8x8xf32>
    %cst_91 = arith.constant dense<0xFF800000> : vector<8xf32>
    %159 = vector.multi_reduction <maximumf>, %158, %cst_91 [1] : vector<8x8xf32> to vector<8xf32>
    %160 = vector.shape_cast %159 : vector<8xf32> to vector<8x1xf32>
    %161 = vector.broadcast %160 : vector<8x1xf32> to vector<8x8xf32>
    %162 = arith.subf %158, %161 : vector<8x8xf32>
    %163 = math.exp %162 : vector<8x8xf32>
    %cst_92 = arith.constant dense<0.000000e+00> : vector<8xf32>
    %164 = vector.multi_reduction <add>, %163, %cst_92 [1] : vector<8x8xf32> to vector<8xf32>
    %165 = vector.shape_cast %164 : vector<8xf32> to vector<8x1xf32>
    %166 = tpu.reciprocal %165 {approx = true} : vector<8x1xf32> -> vector<8x1xf32>
    %167 = vector.broadcast %166 : vector<8x1xf32> to vector<8x8xf32>
    %168 = arith.mulf %163, %167 : vector<8x8xf32>
    %cst_93 = arith.constant dense<0.000000e+00> : vector<8x16xf32>
    %169 = tpu.matmul %168, %151, %cst_93 {dimension_numbers = #tpu.dot_dimension_numbers<[1], [0], [0], [1], [0, 0, 1, 1], [], []>} : vector<8x8xf32>, vector<8x16xf32>, vector<8x16xf32> -> vector<8x16xf32>
    %170 = tpu.concatenate %148, %169 in 0 : vector<8x16xf32>, vector<8x16xf32> -> vector<16x16xf32>
    %171 = vector.extract_strided_slice %30 {offsets = [0, 1, 0, 0], sizes = [1, 1, 16, 32], strides = [1, 1, 1, 1]} : vector<2x2x16x32xf32> to vector<1x1x16x32xf32>
    %172 = vector.shape_cast %171 : vector<1x1x16x32xf32> to vector<16x32xf32>
    %cst_94 = arith.constant dense<0.000000e+00> : vector<16x32xf32>
    %173 = tpu.matmul %170, %172, %cst_94 {dimension_numbers = #tpu.dot_dimension_numbers<[1], [0], [0], [1], [0, 0, 1, 1], [], []>} : vector<16x16xf32>, vector<16x32xf32>, vector<16x32xf32> -> vector<16x32xf32>
    %174 = arith.addf %106, %173 : vector<16x32xf32>
    %175 = vector.extract_strided_slice %31 {offsets = [0, 0, 0], sizes = [1, 1, 32], strides = [1, 1, 1]} : vector<2x1x32xf32> to vector<1x1x32xf32>
    %176 = vector.shape_cast %175 : vector<1x1x32xf32> to vector<1x32xf32>
    %177 = vector.broadcast %176 : vector<1x32xf32> to vector<16x32xf32>
    %178 = arith.addf %174, %177 : vector<16x32xf32>
    %179 = arith.addf %22, %178 : vector<16x32xf32>
    %180 = vector.extract_strided_slice %32 {offsets = [0, 0, 0], sizes = [1, 1, 32], strides = [1, 1, 1]} : vector<2x1x32xf32> to vector<1x1x32xf32>
    %181 = vector.shape_cast %180 : vector<1x1x32xf32> to vector<1x32xf32>
    %182 = vector.extract_strided_slice %33 {offsets = [0, 0, 0], sizes = [1, 1, 32], strides = [1, 1, 1]} : vector<2x1x32xf32> to vector<1x1x32xf32>
    %183 = vector.shape_cast %182 : vector<1x1x32xf32> to vector<1x32xf32>
    %cst_95 = arith.constant dense<0.000000e+00> : vector<16xf32>
    %184 = vector.multi_reduction <add>, %179, %cst_95 [1] : vector<16x32xf32> to vector<16xf32>
    %185 = vector.shape_cast %184 : vector<16xf32> to vector<16x1xf32>
    %cst_96 = arith.constant 3.200000e+01 : f32
    %186 = vector.broadcast %cst_96 : f32 to vector<16x1xf32>
    %187 = arith.divf %185, %186 : vector<16x1xf32>
    %188 = vector.broadcast %187 : vector<16x1xf32> to vector<16x32xf32>
    %189 = arith.subf %179, %188 : vector<16x32xf32>
    %190 = arith.mulf %189, %189 : vector<16x32xf32>
    %cst_97 = arith.constant dense<0.000000e+00> : vector<16xf32>
    %191 = vector.multi_reduction <add>, %190, %cst_97 [1] : vector<16x32xf32> to vector<16xf32>
    %192 = vector.shape_cast %191 : vector<16xf32> to vector<16x1xf32>
    %cst_98 = arith.constant 3.200000e+01 : f32
    %193 = vector.broadcast %cst_98 : f32 to vector<16x1xf32>
    %194 = arith.divf %192, %193 : vector<16x1xf32>
    %cst_99 = arith.constant 9.99999996E-13 : f32
    %195 = vector.broadcast %cst_99 : f32 to vector<16x1xf32>
    %196 = arith.addf %194, %195 : vector<16x1xf32>
    %197 = math.rsqrt %196 : vector<16x1xf32>
    %198 = vector.broadcast %197 : vector<16x1xf32> to vector<16x32xf32>
    %199 = arith.mulf %189, %198 : vector<16x32xf32>
    %200 = vector.broadcast %181 : vector<1x32xf32> to vector<16x32xf32>
    %201 = arith.mulf %199, %200 : vector<16x32xf32>
    %202 = vector.broadcast %183 : vector<1x32xf32> to vector<16x32xf32>
    %203 = arith.addf %201, %202 : vector<16x32xf32>
    %204 = vector.extract_strided_slice %34 {offsets = [0, 0, 0], sizes = [1, 32, 64], strides = [1, 1, 1]} : vector<2x32x64xf32> to vector<1x32x64xf32>
    %205 = vector.shape_cast %204 : vector<1x32x64xf32> to vector<32x64xf32>
    %cst_100 = arith.constant dense<0.000000e+00> : vector<16x64xf32>
    %206 = tpu.matmul %203, %205, %cst_100 {dimension_numbers = #tpu.dot_dimension_numbers<[1], [0], [0], [1], [0, 0, 1, 1], [], []>} : vector<16x32xf32>, vector<32x64xf32>, vector<16x64xf32> -> vector<16x64xf32>
    %207 = vector.extract_strided_slice %35 {offsets = [0, 0, 0], sizes = [1, 1, 64], strides = [1, 1, 1]} : vector<2x1x64xf32> to vector<1x1x64xf32>
    %208 = vector.shape_cast %207 : vector<1x1x64xf32> to vector<1x64xf32>
    %209 = vector.broadcast %208 : vector<1x64xf32> to vector<16x64xf32>
    %210 = arith.addf %206, %209 : vector<16x64xf32>
    %211 = arith.mulf %210, %210 : vector<16x64xf32>
    %212 = arith.mulf %210, %211 : vector<16x64xf32>
    %cst_101 = arith.constant 4.471500e-02 : f32
    %213 = vector.broadcast %cst_101 : f32 to vector<16x64xf32>
    %214 = arith.mulf %213, %212 : vector<16x64xf32>
    %215 = arith.addf %210, %214 : vector<16x64xf32>
    %cst_102 = arith.constant 0.797884583 : f32
    %216 = vector.broadcast %cst_102 : f32 to vector<16x64xf32>
    %217 = arith.mulf %216, %215 : vector<16x64xf32>
    %218 = math.tanh %217 : vector<16x64xf32>
    %cst_103 = arith.constant 1.000000e+00 : f32
    %219 = vector.broadcast %cst_103 : f32 to vector<16x64xf32>
    %220 = arith.addf %219, %218 : vector<16x64xf32>
    %cst_104 = arith.constant 5.000000e-01 : f32
    %221 = vector.broadcast %cst_104 : f32 to vector<16x64xf32>
    %222 = arith.mulf %221, %220 : vector<16x64xf32>
    %223 = arith.mulf %210, %222 : vector<16x64xf32>
    %224 = vector.extract_strided_slice %36 {offsets = [0, 0, 0], sizes = [1, 64, 32], strides = [1, 1, 1]} : vector<2x64x32xf32> to vector<1x64x32xf32>
    %225 = vector.shape_cast %224 : vector<1x64x32xf32> to vector<64x32xf32>
    %cst_105 = arith.constant dense<0.000000e+00> : vector<16x32xf32>
    %226 = tpu.matmul %223, %225, %cst_105 {dimension_numbers = #tpu.dot_dimension_numbers<[1], [0], [0], [1], [0, 0, 1, 1], [], []>} : vector<16x64xf32>, vector<64x32xf32>, vector<16x32xf32> -> vector<16x32xf32>
    %227 = vector.extract_strided_slice %37 {offsets = [0, 0, 0], sizes = [1, 1, 32], strides = [1, 1, 1]} : vector<2x1x32xf32> to vector<1x1x32xf32>
    %228 = vector.shape_cast %227 : vector<1x1x32xf32> to vector<1x32xf32>
    %229 = vector.broadcast %228 : vector<1x32xf32> to vector<16x32xf32>
    %230 = arith.addf %226, %229 : vector<16x32xf32>
    %231 = arith.addf %203, %230 : vector<16x32xf32>
    %232 = vector.extract_strided_slice %38 {offsets = [0, 0, 0], sizes = [1, 1, 32], strides = [1, 1, 1]} : vector<2x1x32xf32> to vector<1x1x32xf32>
    %233 = vector.shape_cast %232 : vector<1x1x32xf32> to vector<1x32xf32>
    %234 = vector.extract_strided_slice %39 {offsets = [0, 0, 0], sizes = [1, 1, 32], strides = [1, 1, 1]} : vector<2x1x32xf32> to vector<1x1x32xf32>
    %235 = vector.shape_cast %234 : vector<1x1x32xf32> to vector<1x32xf32>
    %cst_106 = arith.constant dense<0.000000e+00> : vector<16xf32>
    %236 = vector.multi_reduction <add>, %231, %cst_106 [1] : vector<16x32xf32> to vector<16xf32>
    %237 = vector.shape_cast %236 : vector<16xf32> to vector<16x1xf32>
    %cst_107 = arith.constant 3.200000e+01 : f32
    %238 = vector.broadcast %cst_107 : f32 to vector<16x1xf32>
    %239 = arith.divf %237, %238 : vector<16x1xf32>
    %240 = vector.broadcast %239 : vector<16x1xf32> to vector<16x32xf32>
    %241 = arith.subf %231, %240 : vector<16x32xf32>
    %242 = arith.mulf %241, %241 : vector<16x32xf32>
    %cst_108 = arith.constant dense<0.000000e+00> : vector<16xf32>
    %243 = vector.multi_reduction <add>, %242, %cst_108 [1] : vector<16x32xf32> to vector<16xf32>
    %244 = vector.shape_cast %243 : vector<16xf32> to vector<16x1xf32>
    %cst_109 = arith.constant 3.200000e+01 : f32
    %245 = vector.broadcast %cst_109 : f32 to vector<16x1xf32>
    %246 = arith.divf %244, %245 : vector<16x1xf32>
    %cst_110 = arith.constant 9.99999996E-13 : f32
    %247 = vector.broadcast %cst_110 : f32 to vector<16x1xf32>
    %248 = arith.addf %246, %247 : vector<16x1xf32>
    %249 = math.rsqrt %248 : vector<16x1xf32>
    %250 = vector.broadcast %249 : vector<16x1xf32> to vector<16x32xf32>
    %251 = arith.mulf %241, %250 : vector<16x32xf32>
    %252 = vector.broadcast %233 : vector<1x32xf32> to vector<16x32xf32>
    %253 = arith.mulf %251, %252 : vector<16x32xf32>
    %254 = vector.broadcast %235 : vector<1x32xf32> to vector<16x32xf32>
    %255 = arith.addf %253, %254 : vector<16x32xf32>
    %256 = vector.extract_strided_slice %24 {offsets = [1, 0, 0, 0], sizes = [1, 1, 32, 16], strides = [1, 1, 1, 1]} : vector<2x2x32x16xf32> to vector<1x1x32x16xf32>
    %257 = vector.shape_cast %256 : vector<1x1x32x16xf32> to vector<32x16xf32>
    %cst_111 = arith.constant dense<0.000000e+00> : vector<16x16xf32>
    %258 = tpu.matmul %255, %257, %cst_111 {dimension_numbers = #tpu.dot_dimension_numbers<[1], [0], [0], [1], [0, 0, 1, 1], [], []>} : vector<16x32xf32>, vector<32x16xf32>, vector<16x16xf32> -> vector<16x16xf32>
    %259 = vector.extract_strided_slice %25 {offsets = [1, 0, 0, 0], sizes = [1, 1, 1, 16], strides = [1, 1, 1, 1]} : vector<2x2x1x16xf32> to vector<1x1x1x16xf32>
    %260 = vector.shape_cast %259 : vector<1x1x1x16xf32> to vector<1x16xf32>
    %261 = vector.broadcast %260 : vector<1x16xf32> to vector<16x16xf32>
    %262 = arith.addf %258, %261 : vector<16x16xf32>
    %263 = vector.extract_strided_slice %26 {offsets = [1, 0, 0, 0], sizes = [1, 1, 32, 16], strides = [1, 1, 1, 1]} : vector<2x2x32x16xf32> to vector<1x1x32x16xf32>
    %264 = vector.shape_cast %263 : vector<1x1x32x16xf32> to vector<32x16xf32>
    %cst_112 = arith.constant dense<0.000000e+00> : vector<16x16xf32>
    %265 = tpu.matmul %255, %264, %cst_112 {dimension_numbers = #tpu.dot_dimension_numbers<[1], [0], [0], [1], [0, 0, 1, 1], [], []>} : vector<16x32xf32>, vector<32x16xf32>, vector<16x16xf32> -> vector<16x16xf32>
    %266 = vector.extract_strided_slice %27 {offsets = [1, 0, 0, 0], sizes = [1, 1, 1, 16], strides = [1, 1, 1, 1]} : vector<2x2x1x16xf32> to vector<1x1x1x16xf32>
    %267 = vector.shape_cast %266 : vector<1x1x1x16xf32> to vector<1x16xf32>
    %268 = vector.broadcast %267 : vector<1x16xf32> to vector<16x16xf32>
    %269 = arith.addf %265, %268 : vector<16x16xf32>
    %270 = vector.extract_strided_slice %28 {offsets = [1, 0, 0, 0], sizes = [1, 1, 32, 16], strides = [1, 1, 1, 1]} : vector<2x2x32x16xf32> to vector<1x1x32x16xf32>
    %271 = vector.shape_cast %270 : vector<1x1x32x16xf32> to vector<32x16xf32>
    %cst_113 = arith.constant dense<0.000000e+00> : vector<16x16xf32>
    %272 = tpu.matmul %255, %271, %cst_113 {dimension_numbers = #tpu.dot_dimension_numbers<[1], [0], [0], [1], [0, 0, 1, 1], [], []>} : vector<16x32xf32>, vector<32x16xf32>, vector<16x16xf32> -> vector<16x16xf32>
    %273 = vector.extract_strided_slice %29 {offsets = [1, 0, 0, 0], sizes = [1, 1, 1, 16], strides = [1, 1, 1, 1]} : vector<2x2x1x16xf32> to vector<1x1x1x16xf32>
    %274 = vector.shape_cast %273 : vector<1x1x1x16xf32> to vector<1x16xf32>
    %275 = vector.broadcast %274 : vector<1x16xf32> to vector<16x16xf32>
    %276 = arith.addf %272, %275 : vector<16x16xf32>
    %277 = vector.extract_strided_slice %262 {offsets = [0, 0], sizes = [8, 16], strides = [1, 1]} : vector<16x16xf32> to vector<8x16xf32>
    %278 = vector.extract_strided_slice %269 {offsets = [0, 0], sizes = [8, 16], strides = [1, 1]} : vector<16x16xf32> to vector<8x16xf32>
    %279 = vector.extract_strided_slice %276 {offsets = [0, 0], sizes = [8, 16], strides = [1, 1]} : vector<16x16xf32> to vector<8x16xf32>
    %cst_114 = arith.constant dense<0.000000e+00> : vector<8x8xf32>
    %280 = tpu.matmul %277, %278, %cst_114 {dimension_numbers = #tpu.dot_dimension_numbers<[1], [1], [0], [0], [0, 0, 1, 0], [], []>} : vector<8x16xf32>, vector<8x16xf32>, vector<8x8xf32> -> vector<8x8xf32>
    %cst_115 = arith.constant 2.500000e-01 : f32
    %281 = vector.broadcast %cst_115 : f32 to vector<8x8xf32>
    %282 = arith.mulf %280, %281 : vector<8x8xf32>
    %283 = vector.extract_strided_slice %23 {offsets = [0, 0, 0], sizes = [1, 1, 8], strides = [1, 1, 1]} : vector<2x1x8xf32> to vector<1x1x8xf32>
    %284 = vector.shape_cast %283 : vector<1x1x8xf32> to vector<1x8xf32>
    %285 = vector.broadcast %284 : vector<1x8xf32> to vector<8x8xf32>
    %286 = arith.addf %282, %285 : vector<8x8xf32>
    %cst_116 = arith.constant dense<0xFF800000> : vector<8xf32>
    %287 = vector.multi_reduction <maximumf>, %286, %cst_116 [1] : vector<8x8xf32> to vector<8xf32>
    %288 = vector.shape_cast %287 : vector<8xf32> to vector<8x1xf32>
    %289 = vector.broadcast %288 : vector<8x1xf32> to vector<8x8xf32>
    %290 = arith.subf %286, %289 : vector<8x8xf32>
    %291 = math.exp %290 : vector<8x8xf32>
    %cst_117 = arith.constant dense<0.000000e+00> : vector<8xf32>
    %292 = vector.multi_reduction <add>, %291, %cst_117 [1] : vector<8x8xf32> to vector<8xf32>
    %293 = vector.shape_cast %292 : vector<8xf32> to vector<8x1xf32>
    %294 = tpu.reciprocal %293 {approx = true} : vector<8x1xf32> -> vector<8x1xf32>
    %295 = vector.broadcast %294 : vector<8x1xf32> to vector<8x8xf32>
    %296 = arith.mulf %291, %295 : vector<8x8xf32>
    %cst_118 = arith.constant dense<0.000000e+00> : vector<8x16xf32>
    %297 = tpu.matmul %296, %279, %cst_118 {dimension_numbers = #tpu.dot_dimension_numbers<[1], [0], [0], [1], [0, 0, 1, 1], [], []>} : vector<8x8xf32>, vector<8x16xf32>, vector<8x16xf32> -> vector<8x16xf32>
    %298 = vector.extract_strided_slice %262 {offsets = [8, 0], sizes = [8, 16], strides = [1, 1]} : vector<16x16xf32> to vector<8x16xf32>
    %299 = vector.extract_strided_slice %269 {offsets = [8, 0], sizes = [8, 16], strides = [1, 1]} : vector<16x16xf32> to vector<8x16xf32>
    %300 = vector.extract_strided_slice %276 {offsets = [8, 0], sizes = [8, 16], strides = [1, 1]} : vector<16x16xf32> to vector<8x16xf32>
    %cst_119 = arith.constant dense<0.000000e+00> : vector<8x8xf32>
    %301 = tpu.matmul %298, %299, %cst_119 {dimension_numbers = #tpu.dot_dimension_numbers<[1], [1], [0], [0], [0, 0, 1, 0], [], []>} : vector<8x16xf32>, vector<8x16xf32>, vector<8x8xf32> -> vector<8x8xf32>
    %cst_120 = arith.constant 2.500000e-01 : f32
    %302 = vector.broadcast %cst_120 : f32 to vector<8x8xf32>
    %303 = arith.mulf %301, %302 : vector<8x8xf32>
    %304 = vector.extract_strided_slice %23 {offsets = [1, 0, 0], sizes = [1, 1, 8], strides = [1, 1, 1]} : vector<2x1x8xf32> to vector<1x1x8xf32>
    %305 = vector.shape_cast %304 : vector<1x1x8xf32> to vector<1x8xf32>
    %306 = vector.broadcast %305 : vector<1x8xf32> to vector<8x8xf32>
    %307 = arith.addf %303, %306 : vector<8x8xf32>
    %cst_121 = arith.constant dense<0xFF800000> : vector<8xf32>
    %308 = vector.multi_reduction <maximumf>, %307, %cst_121 [1] : vector<8x8xf32> to vector<8xf32>
    %309 = vector.shape_cast %308 : vector<8xf32> to vector<8x1xf32>
    %310 = vector.broadcast %309 : vector<8x1xf32> to vector<8x8xf32>
    %311 = arith.subf %307, %310 : vector<8x8xf32>
    %312 = math.exp %311 : vector<8x8xf32>
    %cst_122 = arith.constant dense<0.000000e+00> : vector<8xf32>
    %313 = vector.multi_reduction <add>, %312, %cst_122 [1] : vector<8x8xf32> to vector<8xf32>
    %314 = vector.shape_cast %313 : vector<8xf32> to vector<8x1xf32>
    %315 = tpu.reciprocal %314 {approx = true} : vector<8x1xf32> -> vector<8x1xf32>
    %316 = vector.broadcast %315 : vector<8x1xf32> to vector<8x8xf32>
    %317 = arith.mulf %312, %316 : vector<8x8xf32>
    %cst_123 = arith.constant dense<0.000000e+00> : vector<8x16xf32>
    %318 = tpu.matmul %317, %300, %cst_123 {dimension_numbers = #tpu.dot_dimension_numbers<[1], [0], [0], [1], [0, 0, 1, 1], [], []>} : vector<8x8xf32>, vector<8x16xf32>, vector<8x16xf32> -> vector<8x16xf32>
    %319 = tpu.concatenate %297, %318 in 0 : vector<8x16xf32>, vector<8x16xf32> -> vector<16x16xf32>
    %320 = vector.extract_strided_slice %30 {offsets = [1, 0, 0, 0], sizes = [1, 1, 16, 32], strides = [1, 1, 1, 1]} : vector<2x2x16x32xf32> to vector<1x1x16x32xf32>
    %321 = vector.shape_cast %320 : vector<1x1x16x32xf32> to vector<16x32xf32>
    %cst_124 = arith.constant dense<0.000000e+00> : vector<16x32xf32>
    %322 = tpu.matmul %319, %321, %cst_124 {dimension_numbers = #tpu.dot_dimension_numbers<[1], [0], [0], [1], [0, 0, 1, 1], [], []>} : vector<16x16xf32>, vector<16x32xf32>, vector<16x32xf32> -> vector<16x32xf32>
    %323 = vector.extract_strided_slice %24 {offsets = [1, 1, 0, 0], sizes = [1, 1, 32, 16], strides = [1, 1, 1, 1]} : vector<2x2x32x16xf32> to vector<1x1x32x16xf32>
    %324 = vector.shape_cast %323 : vector<1x1x32x16xf32> to vector<32x16xf32>
    %cst_125 = arith.constant dense<0.000000e+00> : vector<16x16xf32>
    %325 = tpu.matmul %255, %324, %cst_125 {dimension_numbers = #tpu.dot_dimension_numbers<[1], [0], [0], [1], [0, 0, 1, 1], [], []>} : vector<16x32xf32>, vector<32x16xf32>, vector<16x16xf32> -> vector<16x16xf32>
    %326 = vector.extract_strided_slice %25 {offsets = [1, 1, 0, 0], sizes = [1, 1, 1, 16], strides = [1, 1, 1, 1]} : vector<2x2x1x16xf32> to vector<1x1x1x16xf32>
    %327 = vector.shape_cast %326 : vector<1x1x1x16xf32> to vector<1x16xf32>
    %328 = vector.broadcast %327 : vector<1x16xf32> to vector<16x16xf32>
    %329 = arith.addf %325, %328 : vector<16x16xf32>
    %330 = vector.extract_strided_slice %26 {offsets = [1, 1, 0, 0], sizes = [1, 1, 32, 16], strides = [1, 1, 1, 1]} : vector<2x2x32x16xf32> to vector<1x1x32x16xf32>
    %331 = vector.shape_cast %330 : vector<1x1x32x16xf32> to vector<32x16xf32>
    %cst_126 = arith.constant dense<0.000000e+00> : vector<16x16xf32>
    %332 = tpu.matmul %255, %331, %cst_126 {dimension_numbers = #tpu.dot_dimension_numbers<[1], [0], [0], [1], [0, 0, 1, 1], [], []>} : vector<16x32xf32>, vector<32x16xf32>, vector<16x16xf32> -> vector<16x16xf32>
    %333 = vector.extract_strided_slice %27 {offsets = [1, 1, 0, 0], sizes = [1, 1, 1, 16], strides = [1, 1, 1, 1]} : vector<2x2x1x16xf32> to vector<1x1x1x16xf32>
    %334 = vector.shape_cast %333 : vector<1x1x1x16xf32> to vector<1x16xf32>
    %335 = vector.broadcast %334 : vector<1x16xf32> to vector<16x16xf32>
    %336 = arith.addf %332, %335 : vector<16x16xf32>
    %337 = vector.extract_strided_slice %28 {offsets = [1, 1, 0, 0], sizes = [1, 1, 32, 16], strides = [1, 1, 1, 1]} : vector<2x2x32x16xf32> to vector<1x1x32x16xf32>
    %338 = vector.shape_cast %337 : vector<1x1x32x16xf32> to vector<32x16xf32>
    %cst_127 = arith.constant dense<0.000000e+00> : vector<16x16xf32>
    %339 = tpu.matmul %255, %338, %cst_127 {dimension_numbers = #tpu.dot_dimension_numbers<[1], [0], [0], [1], [0, 0, 1, 1], [], []>} : vector<16x32xf32>, vector<32x16xf32>, vector<16x16xf32> -> vector<16x16xf32>
    %340 = vector.extract_strided_slice %29 {offsets = [1, 1, 0, 0], sizes = [1, 1, 1, 16], strides = [1, 1, 1, 1]} : vector<2x2x1x16xf32> to vector<1x1x1x16xf32>
    %341 = vector.shape_cast %340 : vector<1x1x1x16xf32> to vector<1x16xf32>
    %342 = vector.broadcast %341 : vector<1x16xf32> to vector<16x16xf32>
    %343 = arith.addf %339, %342 : vector<16x16xf32>
    %344 = vector.extract_strided_slice %329 {offsets = [0, 0], sizes = [8, 16], strides = [1, 1]} : vector<16x16xf32> to vector<8x16xf32>
    %345 = vector.extract_strided_slice %336 {offsets = [0, 0], sizes = [8, 16], strides = [1, 1]} : vector<16x16xf32> to vector<8x16xf32>
    %346 = vector.extract_strided_slice %343 {offsets = [0, 0], sizes = [8, 16], strides = [1, 1]} : vector<16x16xf32> to vector<8x16xf32>
    %cst_128 = arith.constant dense<0.000000e+00> : vector<8x8xf32>
    %347 = tpu.matmul %344, %345, %cst_128 {dimension_numbers = #tpu.dot_dimension_numbers<[1], [1], [0], [0], [0, 0, 1, 0], [], []>} : vector<8x16xf32>, vector<8x16xf32>, vector<8x8xf32> -> vector<8x8xf32>
    %cst_129 = arith.constant 2.500000e-01 : f32
    %348 = vector.broadcast %cst_129 : f32 to vector<8x8xf32>
    %349 = arith.mulf %347, %348 : vector<8x8xf32>
    %350 = vector.extract_strided_slice %23 {offsets = [0, 0, 0], sizes = [1, 1, 8], strides = [1, 1, 1]} : vector<2x1x8xf32> to vector<1x1x8xf32>
    %351 = vector.shape_cast %350 : vector<1x1x8xf32> to vector<1x8xf32>
    %352 = vector.broadcast %351 : vector<1x8xf32> to vector<8x8xf32>
    %353 = arith.addf %349, %352 : vector<8x8xf32>
    %cst_130 = arith.constant dense<0xFF800000> : vector<8xf32>
    %354 = vector.multi_reduction <maximumf>, %353, %cst_130 [1] : vector<8x8xf32> to vector<8xf32>
    %355 = vector.shape_cast %354 : vector<8xf32> to vector<8x1xf32>
    %356 = vector.broadcast %355 : vector<8x1xf32> to vector<8x8xf32>
    %357 = arith.subf %353, %356 : vector<8x8xf32>
    %358 = math.exp %357 : vector<8x8xf32>
    %cst_131 = arith.constant dense<0.000000e+00> : vector<8xf32>
    %359 = vector.multi_reduction <add>, %358, %cst_131 [1] : vector<8x8xf32> to vector<8xf32>
    %360 = vector.shape_cast %359 : vector<8xf32> to vector<8x1xf32>
    %361 = tpu.reciprocal %360 {approx = true} : vector<8x1xf32> -> vector<8x1xf32>
    %362 = vector.broadcast %361 : vector<8x1xf32> to vector<8x8xf32>
    %363 = arith.mulf %358, %362 : vector<8x8xf32>
    %cst_132 = arith.constant dense<0.000000e+00> : vector<8x16xf32>
    %364 = tpu.matmul %363, %346, %cst_132 {dimension_numbers = #tpu.dot_dimension_numbers<[1], [0], [0], [1], [0, 0, 1, 1], [], []>} : vector<8x8xf32>, vector<8x16xf32>, vector<8x16xf32> -> vector<8x16xf32>
    %365 = vector.extract_strided_slice %329 {offsets = [8, 0], sizes = [8, 16], strides = [1, 1]} : vector<16x16xf32> to vector<8x16xf32>
    %366 = vector.extract_strided_slice %336 {offsets = [8, 0], sizes = [8, 16], strides = [1, 1]} : vector<16x16xf32> to vector<8x16xf32>
    %367 = vector.extract_strided_slice %343 {offsets = [8, 0], sizes = [8, 16], strides = [1, 1]} : vector<16x16xf32> to vector<8x16xf32>
    %cst_133 = arith.constant dense<0.000000e+00> : vector<8x8xf32>
    %368 = tpu.matmul %365, %366, %cst_133 {dimension_numbers = #tpu.dot_dimension_numbers<[1], [1], [0], [0], [0, 0, 1, 0], [], []>} : vector<8x16xf32>, vector<8x16xf32>, vector<8x8xf32> -> vector<8x8xf32>
    %cst_134 = arith.constant 2.500000e-01 : f32
    %369 = vector.broadcast %cst_134 : f32 to vector<8x8xf32>
    %370 = arith.mulf %368, %369 : vector<8x8xf32>
    %371 = vector.extract_strided_slice %23 {offsets = [1, 0, 0], sizes = [1, 1, 8], strides = [1, 1, 1]} : vector<2x1x8xf32> to vector<1x1x8xf32>
    %372 = vector.shape_cast %371 : vector<1x1x8xf32> to vector<1x8xf32>
    %373 = vector.broadcast %372 : vector<1x8xf32> to vector<8x8xf32>
    %374 = arith.addf %370, %373 : vector<8x8xf32>
    %cst_135 = arith.constant dense<0xFF800000> : vector<8xf32>
    %375 = vector.multi_reduction <maximumf>, %374, %cst_135 [1] : vector<8x8xf32> to vector<8xf32>
    %376 = vector.shape_cast %375 : vector<8xf32> to vector<8x1xf32>
    %377 = vector.broadcast %376 : vector<8x1xf32> to vector<8x8xf32>
    %378 = arith.subf %374, %377 : vector<8x8xf32>
    %379 = math.exp %378 : vector<8x8xf32>
    %cst_136 = arith.constant dense<0.000000e+00> : vector<8xf32>
    %380 = vector.multi_reduction <add>, %379, %cst_136 [1] : vector<8x8xf32> to vector<8xf32>
    %381 = vector.shape_cast %380 : vector<8xf32> to vector<8x1xf32>
    %382 = tpu.reciprocal %381 {approx = true} : vector<8x1xf32> -> vector<8x1xf32>
    %383 = vector.broadcast %382 : vector<8x1xf32> to vector<8x8xf32>
    %384 = arith.mulf %379, %383 : vector<8x8xf32>
    %cst_137 = arith.constant dense<0.000000e+00> : vector<8x16xf32>
    %385 = tpu.matmul %384, %367, %cst_137 {dimension_numbers = #tpu.dot_dimension_numbers<[1], [0], [0], [1], [0, 0, 1, 1], [], []>} : vector<8x8xf32>, vector<8x16xf32>, vector<8x16xf32> -> vector<8x16xf32>
    %386 = tpu.concatenate %364, %385 in 0 : vector<8x16xf32>, vector<8x16xf32> -> vector<16x16xf32>
    %387 = vector.extract_strided_slice %30 {offsets = [1, 1, 0, 0], sizes = [1, 1, 16, 32], strides = [1, 1, 1, 1]} : vector<2x2x16x32xf32> to vector<1x1x16x32xf32>
    %388 = vector.shape_cast %387 : vector<1x1x16x32xf32> to vector<16x32xf32>
    %cst_138 = arith.constant dense<0.000000e+00> : vector<16x32xf32>
    %389 = tpu.matmul %386, %388, %cst_138 {dimension_numbers = #tpu.dot_dimension_numbers<[1], [0], [0], [1], [0, 0, 1, 1], [], []>} : vector<16x16xf32>, vector<16x32xf32>, vector<16x32xf32> -> vector<16x32xf32>
    %390 = arith.addf %322, %389 : vector<16x32xf32>
    %391 = vector.extract_strided_slice %31 {offsets = [1, 0, 0], sizes = [1, 1, 32], strides = [1, 1, 1]} : vector<2x1x32xf32> to vector<1x1x32xf32>
    %392 = vector.shape_cast %391 : vector<1x1x32xf32> to vector<1x32xf32>
    %393 = vector.broadcast %392 : vector<1x32xf32> to vector<16x32xf32>
    %394 = arith.addf %390, %393 : vector<16x32xf32>
    %395 = arith.addf %255, %394 : vector<16x32xf32>
    %396 = vector.extract_strided_slice %32 {offsets = [1, 0, 0], sizes = [1, 1, 32], strides = [1, 1, 1]} : vector<2x1x32xf32> to vector<1x1x32xf32>
    %397 = vector.shape_cast %396 : vector<1x1x32xf32> to vector<1x32xf32>
    %398 = vector.extract_strided_slice %33 {offsets = [1, 0, 0], sizes = [1, 1, 32], strides = [1, 1, 1]} : vector<2x1x32xf32> to vector<1x1x32xf32>
    %399 = vector.shape_cast %398 : vector<1x1x32xf32> to vector<1x32xf32>
    %cst_139 = arith.constant dense<0.000000e+00> : vector<16xf32>
    %400 = vector.multi_reduction <add>, %395, %cst_139 [1] : vector<16x32xf32> to vector<16xf32>
    %401 = vector.shape_cast %400 : vector<16xf32> to vector<16x1xf32>
    %cst_140 = arith.constant 3.200000e+01 : f32
    %402 = vector.broadcast %cst_140 : f32 to vector<16x1xf32>
    %403 = arith.divf %401, %402 : vector<16x1xf32>
    %404 = vector.broadcast %403 : vector<16x1xf32> to vector<16x32xf32>
    %405 = arith.subf %395, %404 : vector<16x32xf32>
    %406 = arith.mulf %405, %405 : vector<16x32xf32>
    %cst_141 = arith.constant dense<0.000000e+00> : vector<16xf32>
    %407 = vector.multi_reduction <add>, %406, %cst_141 [1] : vector<16x32xf32> to vector<16xf32>
    %408 = vector.shape_cast %407 : vector<16xf32> to vector<16x1xf32>
    %cst_142 = arith.constant 3.200000e+01 : f32
    %409 = vector.broadcast %cst_142 : f32 to vector<16x1xf32>
    %410 = arith.divf %408, %409 : vector<16x1xf32>
    %cst_143 = arith.constant 9.99999996E-13 : f32
    %411 = vector.broadcast %cst_143 : f32 to vector<16x1xf32>
    %412 = arith.addf %410, %411 : vector<16x1xf32>
    %413 = math.rsqrt %412 : vector<16x1xf32>
    %414 = vector.broadcast %413 : vector<16x1xf32> to vector<16x32xf32>
    %415 = arith.mulf %405, %414 : vector<16x32xf32>
    %416 = vector.broadcast %397 : vector<1x32xf32> to vector<16x32xf32>
    %417 = arith.mulf %415, %416 : vector<16x32xf32>
    %418 = vector.broadcast %399 : vector<1x32xf32> to vector<16x32xf32>
    %419 = arith.addf %417, %418 : vector<16x32xf32>
    %420 = vector.extract_strided_slice %34 {offsets = [1, 0, 0], sizes = [1, 32, 64], strides = [1, 1, 1]} : vector<2x32x64xf32> to vector<1x32x64xf32>
    %421 = vector.shape_cast %420 : vector<1x32x64xf32> to vector<32x64xf32>
    %cst_144 = arith.constant dense<0.000000e+00> : vector<16x64xf32>
    %422 = tpu.matmul %419, %421, %cst_144 {dimension_numbers = #tpu.dot_dimension_numbers<[1], [0], [0], [1], [0, 0, 1, 1], [], []>} : vector<16x32xf32>, vector<32x64xf32>, vector<16x64xf32> -> vector<16x64xf32>
    %423 = vector.extract_strided_slice %35 {offsets = [1, 0, 0], sizes = [1, 1, 64], strides = [1, 1, 1]} : vector<2x1x64xf32> to vector<1x1x64xf32>
    %424 = vector.shape_cast %423 : vector<1x1x64xf32> to vector<1x64xf32>
    %425 = vector.broadcast %424 : vector<1x64xf32> to vector<16x64xf32>
    %426 = arith.addf %422, %425 : vector<16x64xf32>
    %427 = arith.mulf %426, %426 : vector<16x64xf32>
    %428 = arith.mulf %426, %427 : vector<16x64xf32>
    %cst_145 = arith.constant 4.471500e-02 : f32
    %429 = vector.broadcast %cst_145 : f32 to vector<16x64xf32>
    %430 = arith.mulf %429, %428 : vector<16x64xf32>
    %431 = arith.addf %426, %430 : vector<16x64xf32>
    %cst_146 = arith.constant 0.797884583 : f32
    %432 = vector.broadcast %cst_146 : f32 to vector<16x64xf32>
    %433 = arith.mulf %432, %431 : vector<16x64xf32>
    %434 = math.tanh %433 : vector<16x64xf32>
    %cst_147 = arith.constant 1.000000e+00 : f32
    %435 = vector.broadcast %cst_147 : f32 to vector<16x64xf32>
    %436 = arith.addf %435, %434 : vector<16x64xf32>
    %cst_148 = arith.constant 5.000000e-01 : f32
    %437 = vector.broadcast %cst_148 : f32 to vector<16x64xf32>
    %438 = arith.mulf %437, %436 : vector<16x64xf32>
    %439 = arith.mulf %426, %438 : vector<16x64xf32>
    %440 = vector.extract_strided_slice %36 {offsets = [1, 0, 0], sizes = [1, 64, 32], strides = [1, 1, 1]} : vector<2x64x32xf32> to vector<1x64x32xf32>
    %441 = vector.shape_cast %440 : vector<1x64x32xf32> to vector<64x32xf32>
    %cst_149 = arith.constant dense<0.000000e+00> : vector<16x32xf32>
    %442 = tpu.matmul %439, %441, %cst_149 {dimension_numbers = #tpu.dot_dimension_numbers<[1], [0], [0], [1], [0, 0, 1, 1], [], []>} : vector<16x64xf32>, vector<64x32xf32>, vector<16x32xf32> -> vector<16x32xf32>
    %443 = vector.extract_strided_slice %37 {offsets = [1, 0, 0], sizes = [1, 1, 32], strides = [1, 1, 1]} : vector<2x1x32xf32> to vector<1x1x32xf32>
    %444 = vector.shape_cast %443 : vector<1x1x32xf32> to vector<1x32xf32>
    %445 = vector.broadcast %444 : vector<1x32xf32> to vector<16x32xf32>
    %446 = arith.addf %442, %445 : vector<16x32xf32>
    %447 = arith.addf %419, %446 : vector<16x32xf32>
    %448 = vector.extract_strided_slice %38 {offsets = [1, 0, 0], sizes = [1, 1, 32], strides = [1, 1, 1]} : vector<2x1x32xf32> to vector<1x1x32xf32>
    %449 = vector.shape_cast %448 : vector<1x1x32xf32> to vector<1x32xf32>
    %450 = vector.extract_strided_slice %39 {offsets = [1, 0, 0], sizes = [1, 1, 32], strides = [1, 1, 1]} : vector<2x1x32xf32> to vector<1x1x32xf32>
    %451 = vector.shape_cast %450 : vector<1x1x32xf32> to vector<1x32xf32>
    %cst_150 = arith.constant dense<0.000000e+00> : vector<16xf32>
    %452 = vector.multi_reduction <add>, %447, %cst_150 [1] : vector<16x32xf32> to vector<16xf32>
    %453 = vector.shape_cast %452 : vector<16xf32> to vector<16x1xf32>
    %cst_151 = arith.constant 3.200000e+01 : f32
    %454 = vector.broadcast %cst_151 : f32 to vector<16x1xf32>
    %455 = arith.divf %453, %454 : vector<16x1xf32>
    %456 = vector.broadcast %455 : vector<16x1xf32> to vector<16x32xf32>
    %457 = arith.subf %447, %456 : vector<16x32xf32>
    %458 = arith.mulf %457, %457 : vector<16x32xf32>
    %cst_152 = arith.constant dense<0.000000e+00> : vector<16xf32>
    %459 = vector.multi_reduction <add>, %458, %cst_152 [1] : vector<16x32xf32> to vector<16xf32>
    %460 = vector.shape_cast %459 : vector<16xf32> to vector<16x1xf32>
    %cst_153 = arith.constant 3.200000e+01 : f32
    %461 = vector.broadcast %cst_153 : f32 to vector<16x1xf32>
    %462 = arith.divf %460, %461 : vector<16x1xf32>
    %cst_154 = arith.constant 9.99999996E-13 : f32
    %463 = vector.broadcast %cst_154 : f32 to vector<16x1xf32>
    %464 = arith.addf %462, %463 : vector<16x1xf32>
    %465 = math.rsqrt %464 : vector<16x1xf32>
    %466 = vector.broadcast %465 : vector<16x1xf32> to vector<16x32xf32>
    %467 = arith.mulf %457, %466 : vector<16x32xf32>
    %468 = vector.broadcast %449 : vector<1x32xf32> to vector<16x32xf32>
    %469 = arith.mulf %467, %468 : vector<16x32xf32>
    %470 = vector.broadcast %451 : vector<1x32xf32> to vector<16x32xf32>
    %471 = arith.addf %469, %470 : vector<16x32xf32>
    %c0_155 = arith.constant 0 : index
    %c0_156 = arith.constant 0 : index
    %472 = vector.load %arg20[%c0_155, %c0_156] : memref<32x32xf32, #tpu.memory_space<vmem>>, vector<32x32xf32>
    %cst_157 = arith.constant dense<0.000000e+00> : vector<16x32xf32>
    %473 = tpu.matmul %471, %472, %cst_157 {dimension_numbers = #tpu.dot_dimension_numbers<[1], [0], [0], [1], [0, 0, 1, 1], [], []>} : vector<16x32xf32>, vector<32x32xf32>, vector<16x32xf32> -> vector<16x32xf32>
    %c0_158 = arith.constant 0 : index
    %c0_159 = arith.constant 0 : index
    %474 = vector.load %arg21[%c0_158, %c0_159] : memref<1x32xf32, #tpu.memory_space<vmem>>, vector<1x32xf32>
    %475 = vector.broadcast %474 : vector<1x32xf32> to vector<16x32xf32>
    %476 = arith.addf %473, %475 : vector<16x32xf32>
    %477 = math.tanh %476 : vector<16x32xf32>
    %c0_160 = arith.constant 0 : index
    %c0_161 = arith.constant 0 : index
    %478 = vector.load %arg22[%c0_160, %c0_161] : memref<32x128xf32, #tpu.memory_space<vmem>>, vector<32x128xf32>
    %cst_162 = arith.constant dense<0.000000e+00> : vector<16x128xf32>
    %479 = tpu.matmul %477, %478, %cst_162 {dimension_numbers = #tpu.dot_dimension_numbers<[1], [0], [0], [1], [0, 0, 1, 1], [], []>} : vector<16x32xf32>, vector<32x128xf32>, vector<16x128xf32> -> vector<16x128xf32>
    %c0_163 = arith.constant 0 : index
    %c0_164 = arith.constant 0 : index
    %480 = vector.load %arg23[%c0_163, %c0_164] : memref<1x128xf32, #tpu.memory_space<vmem>>, vector<1x128xf32>
    %481 = vector.broadcast %480 : vector<1x128xf32> to vector<16x128xf32>
    %482 = arith.addf %479, %481 : vector<16x128xf32>
    %483 = vector.extract_strided_slice %482 {offsets = [0, 0], sizes = [1, 128], strides = [1, 1]} : vector<16x128xf32> to vector<1x128xf32>
    %c0_165 = arith.constant 0 : index
    %c0_166 = arith.constant 0 : index
    %484 = vector.load %arg24[%c0_165, %c0_166] : memref<2x128xf32, #tpu.memory_space<vmem>>, vector<1x128xf32>
    tpu.vector_store %arg24[%c0_165, %c0_166], %483 {strides = array<i32>} : memref<2x128xf32, #tpu.memory_space<vmem>>, vector<1x128xf32>,
    %485 = vector.extract_strided_slice %482 {offsets = [8, 0], sizes = [1, 128], strides = [1, 1]} : vector<16x128xf32> to vector<1x128xf32>
    %c1 = arith.constant 1 : index
    %c0_167 = arith.constant 0 : index
    %486 = vector.load %arg24[%c1, %c0_167] : memref<2x128xf32, #tpu.memory_space<vmem>>, vector<1x128xf32>
    tpu.vector_store %arg24[%c1, %c0_167], %485 {strides = array<i32>} : memref<2x128xf32, #tpu.memory_space<vmem>>, vector<1x128xf32>,
    return
  }
}

</mosaic_0001>

<llo_original>
// kernel: _lambda_.1
$region0: #{_lambda_.1}
  #allocation0 [shape = 'u32[]', space=smem, size = 0x4, offset = 0x4, fixed_abs, tag = 'smem constant byte address 0x4 - core index']
  #allocation1 [shape = 'u32[72,128]{1,0:T(1,128)}', space=vmem, size = 0x9000, scoped, tag = 'internal scratch']
  %s0 = inlined_call_operand.vmem [shape: f32[16,32], index: 0, kind: input, shape index: {}]
  %s1 = inlined_call_operand.vmem [shape: f32[2,1,8], index: 1, kind: input, shape index: {}]
  %s2 = inlined_call_operand.vmem [shape: f32[1,32], index: 2, kind: input, shape index: {}]
  %s3 = inlined_call_operand.vmem [shape: f32[1,32], index: 3, kind: input, shape index: {}]
  %s4 = inlined_call_operand.vmem [shape: f32[2,2,32,16], index: 4, kind: input, shape index: {}]
  %s5 = inlined_call_operand.vmem [shape: f32[2,2,1,16], index: 5, kind: input, shape index: {}]
  %s6 = inlined_call_operand.vmem [shape: f32[2,2,32,16], index: 6, kind: input, shape index: {}]
  %s7 = inlined_call_operand.vmem [shape: f32[2,2,1,16], index: 7, kind: input, shape index: {}]
  %s8 = inlined_call_operand.vmem [shape: f32[2,2,32,16], index: 8, kind: input, shape index: {}]
  %s9 = inlined_call_operand.vmem [shape: f32[2,2,1,16], index: 9, kind: input, shape index: {}]
  %s10 = inlined_call_operand.vmem [shape: f32[2,2,16,32], index: 10, kind: input, shape index: {}]
  %s11 = inlined_call_operand.vmem [shape: f32[2,1,32], index: 11, kind: input, shape index: {}]
  %s12 = inlined_call_operand.vmem [shape: f32[2,1,32], index: 12, kind: input, shape index: {}]
  %s13 = inlined_call_operand.vmem [shape: f32[2,1,32], index: 13, kind: input, shape index: {}]
  %s14 = inlined_call_operand.vmem [shape: f32[2,32,64], index: 14, kind: input, shape index: {}]
  %s15 = inlined_call_operand.vmem [shape: f32[2,1,64], index: 15, kind: input, shape index: {}]
  %s16 = inlined_call_operand.vmem [shape: f32[2,64,32], index: 16, kind: input, shape index: {}]
  %s17 = inlined_call_operand.vmem [shape: f32[2,1,32], index: 17, kind: input, shape index: {}]
  %s18 = inlined_call_operand.vmem [shape: f32[2,1,32], index: 18, kind: input, shape index: {}]
  %s19 = inlined_call_operand.vmem [shape: f32[2,1,32], index: 19, kind: input, shape index: {}]
  %s20 = inlined_call_operand.vmem [shape: f32[32,32], index: 20, kind: input, shape index: {}]
  %s21 = inlined_call_operand.vmem [shape: f32[1,32], index: 21, kind: input, shape index: {}]
  %s22 = inlined_call_operand.vmem [shape: f32[32,128], index: 22, kind: input, shape index: {}]
  %s23 = inlined_call_operand.vmem [shape: f32[1,128], index: 23, kind: input, shape index: {}]
  %s24 = inlined_call_operand.hbm [shape: f32[2,128], index: 24, kind: output, shape index: {}]
  %s25 = sld [smem:[#allocation0]]
  $region106: #{_lambda_.1} parent=0
    _
  %s27 = ssub.s32 1, %s25
  %s28 = scalar_select 0, %s27, %s25
  $region1: #{_lambda_.1} parent=0
    #allocation2 [shape = 'u8[1024]{0}', space=vmem, size = 0x400, scoped, tag = 'output window, operand 0, single buffered']
    #allocation3 [shape = 's32[1]{0}', space=sflag, size = 0x4, scoped, tag = 'scoped memory for _lambda_.1']
    %29 = vsyncpa [#allocation3], 0
    // Predicated region
    $region2: #{_lambda_.1} parent=1 // pred_check
      _
    $region3: #{_lambda_.1} parent=1 // pred_check_branch
      %31 = sbr.rel (0) target = $region5
    $region4: #{_lambda_.1} parent=1 // pred_region
      _
    $region5: #{_lambda_.1} parent=1 // pred_fallthru
      _
    // Predicated region
    $region6: #{_lambda_.1} parent=1 // pred_check
      _
    $region7: #{_lambda_.1} parent=1 // pred_check_branch
      %33 = sbr.rel (0) target = $region9
    $region8: #{_lambda_.1} parent=1 // pred_region
      _
    $region9: #{_lambda_.1} parent=1 // pred_fallthru
      _
    // Predicated region
    $region10: #{_lambda_.1} parent=1 // pred_check
      _
    $region11: #{_lambda_.1} parent=1 // pred_check_branch
      %35 = sbr.rel (0) target = $region13
    $region12: #{_lambda_.1} parent=1 // pred_region
      _
    $region13: #{_lambda_.1} parent=1 // pred_fallthru
      _
    // Predicated region
    $region14: #{_lambda_.1} parent=1 // pred_check
      _
    $region15: #{_lambda_.1} parent=1 // pred_check_branch
      %37 = sbr.rel (0) target = $region17
    $region16: #{_lambda_.1} parent=1 // pred_region
      _
    $region17: #{_lambda_.1} parent=1 // pred_fallthru
      _
    // Predicated region
    $region18: #{_lambda_.1} parent=1 // pred_check
      _
    $region19: #{_lambda_.1} parent=1 // pred_check_branch
      %39 = sbr.rel (0) target = $region21
    $region20: #{_lambda_.1} parent=1 // pred_region
      _
    $region21: #{_lambda_.1} parent=1 // pred_fallthru
      _
    // Predicated region
    $region22: #{_lambda_.1} parent=1 // pred_check
      _
    $region23: #{_lambda_.1} parent=1 // pred_check_branch
      %41 = sbr.rel (0) target = $region25
    $region24: #{_lambda_.1} parent=1 // pred_region
      _
    $region25: #{_lambda_.1} parent=1 // pred_fallthru
      _
    // Predicated region
    $region26: #{_lambda_.1} parent=1 // pred_check
      _
    $region27: #{_lambda_.1} parent=1 // pred_check_branch
      %43 = sbr.rel (0) target = $region29
    $region28: #{_lambda_.1} parent=1 // pred_region
      _
    $region29: #{_lambda_.1} parent=1 // pred_fallthru
      _
    // Predicated region
    $region30: #{_lambda_.1} parent=1 // pred_check
      _
    $region31: #{_lambda_.1} parent=1 // pred_check_branch
      %45 = sbr.rel (0) target = $region33
    $region32: #{_lambda_.1} parent=1 // pred_region
      _
    $region33: #{_lambda_.1} parent=1 // pred_fallthru
      _
    // Predicated region
    $region34: #{_lambda_.1} parent=1 // pred_check
      _
    $region35: #{_lambda_.1} parent=1 // pred_check_branch
      %47 = sbr.rel (0) target = $region37
    $region36: #{_lambda_.1} parent=1 // pred_region
      _
    $region37: #{_lambda_.1} parent=1 // pred_fallthru
      _
    // Predicated region
    $region38: #{_lambda_.1} parent=1 // pred_check
      _
    $region39: #{_lambda_.1} parent=1 // pred_check_branch
      %49 = sbr.rel (0) target = $region41
    $region40: #{_lambda_.1} parent=1 // pred_region
      _
    $region41: #{_lambda_.1} parent=1 // pred_fallthru
      _
    // Predicated region
    $region42: #{_lambda_.1} parent=1 // pred_check
      _
    $region43: #{_lambda_.1} parent=1 // pred_check_branch
      %51 = sbr.rel (0) target = $region45
    $region44: #{_lambda_.1} parent=1 // pred_region
      _
    $region45: #{_lambda_.1} parent=1 // pred_fallthru
      _
    // Predicated region
    $region46: #{_lambda_.1} parent=1 // pred_check
      _
    $region47: #{_lambda_.1} parent=1 // pred_check_branch
      %53 = sbr.rel (0) target = $region49
    $region48: #{_lambda_.1} parent=1 // pred_region
      _
    $region49: #{_lambda_.1} parent=1 // pred_fallthru
      _
    // Predicated region
    $region50: #{_lambda_.1} parent=1 // pred_check
      _
    $region51: #{_lambda_.1} parent=1 // pred_check_branch
      %55 = sbr.rel (0) target = $region53
    $region52: #{_lambda_.1} parent=1 // pred_region
      _
    $region53: #{_lambda_.1} parent=1 // pred_fallthru
      _
    // Predicated region
    $region54: #{_lambda_.1} parent=1 // pred_check
      _
    $region55: #{_lambda_.1} parent=1 // pred_check_branch
      %57 = sbr.rel (0) target = $region57
    $region56: #{_lambda_.1} parent=1 // pred_region
      _
    $region57: #{_lambda_.1} parent=1 // pred_fallthru
      _
    // Predicated region
    $region58: #{_lambda_.1} parent=1 // pred_check
      _
    $region59: #{_lambda_.1} parent=1 // pred_check_branch
      %59 = sbr.rel (0) target = $region61
    $region60: #{_lambda_.1} parent=1 // pred_region
      _
    $region61: #{_lambda_.1} parent=1 // pred_fallthru
      _
    // Predicated region
    $region62: #{_lambda_.1} parent=1 // pred_check
      _
    $region63: #{_lambda_.1} parent=1 // pred_check_branch
      %61 = sbr.rel (0) target = $region65
    $region64: #{_lambda_.1} parent=1 // pred_region
      _
    $region65: #{_lambda_.1} parent=1 // pred_fallthru
      _
    // Predicated region
    $region66: #{_lambda_.1} parent=1 // pred_check
      _
    $region67: #{_lambda_.1} parent=1 // pred_check_branch
      %63 = sbr.rel (0) target = $region69
    $region68: #{_lambda_.1} parent=1 // pred_region
      _
    $region69: #{_lambda_.1} parent=1 // pred_fallthru
      _
    // Predicated region
    $region70: #{_lambda_.1} parent=1 // pred_check
      _
    $region71: #{_lambda_.1} parent=1 // pred_check_branch
      %65 = sbr.rel (0) target = $region73
    $region72: #{_lambda_.1} parent=1 // pred_region
      _
    $region73: #{_lambda_.1} parent=1 // pred_fallthru
      _
    // Predicated region
    $region74: #{_lambda_.1} parent=1 // pred_check
      _
    $region75: #{_lambda_.1} parent=1 // pred_check_branch
      %67 = sbr.rel (0) target = $region77
    $region76: #{_lambda_.1} parent=1 // pred_region
      _
    $region77: #{_lambda_.1} parent=1 // pred_fallthru
      _
    // Predicated region
    $region78: #{_lambda_.1} parent=1 // pred_check
      _
    $region79: #{_lambda_.1} parent=1 // pred_check_branch
      %69 = sbr.rel (0) target = $region81
    $region80: #{_lambda_.1} parent=1 // pred_region
      _
    $region81: #{_lambda_.1} parent=1 // pred_fallthru
      _
    // Predicated region
    $region82: #{_lambda_.1} parent=1 // pred_check
      _
    $region83: #{_lambda_.1} parent=1 // pred_check_branch
      %71 = sbr.rel (0) target = $region85
    $region84: #{_lambda_.1} parent=1 // pred_region
      _
    $region85: #{_lambda_.1} parent=1 // pred_fallthru
      _
    // Predicated region
    $region86: #{_lambda_.1} parent=1 // pred_check
      _
    $region87: #{_lambda_.1} parent=1 // pred_check_branch
      %73 = sbr.rel (0) target = $region89
    $region88: #{_lambda_.1} parent=1 // pred_region
      _
    $region89: #{_lambda_.1} parent=1 // pred_fallthru
      _
    // Predicated region
    $region90: #{_lambda_.1} parent=1 // pred_check
      _
    $region91: #{_lambda_.1} parent=1 // pred_check_branch
      %75 = sbr.rel (0) target = $region93
    $region92: #{_lambda_.1} parent=1 // pred_region
      _
    $region93: #{_lambda_.1} parent=1 // pred_fallthru
      _
    // Predicated region
    $region94: #{_lambda_.1} parent=1 // pred_check
      _
    $region95: #{_lambda_.1} parent=1 // pred_check_branch
      %77 = sbr.rel (0) target = $region97
    $region96: #{_lambda_.1} parent=1 // pred_region
      _
    $region97: #{_lambda_.1} parent=1 // pred_fallthru
      _
    %v78 = vld [vmem:[%s0] sm:$0xff]
    %v79 = vld [vmem:[%s0 + $0x8] sm:$0xff]
    %v80 = vld [vmem:[%s2] sm:$0x1]
    %v81 = vld [vmem:[%s3] sm:$0x1]
    %vm82 = vcmask 261120
    %v83 = vsel %vm82, %v78, 0.0
    %84 = vadd.xlane.f32.xlu0 %v83
    %v85 = vpop.xlane.xlu0 %84
    %v86 = vsel %vm82, %v79, 0.0
    %87 = vadd.xlane.f32.xlu0 %v86
    %v88 = vpop.xlane.xlu0 %87
    %v89 = vrcp.pop 32.0
    %v90 = vmul.f32 32.0, %v89
    %v91 = vsub.f32 1.0, %v90
    %v92 = vmul.f32 %v89, %v91
    %v93 = vadd.f32 %v89, %v92
    %vm94 = vweird.f32 %v89
    %v95 = vsel %vm94, %v89, %v93
    %v96 = vmul.f32 %v85, %v95
    %v97 = vmul.f32 %v88, %v95
    %v98 = vsub.f32 %v78, %v96
    %v99 = vsub.f32 %v79, %v97
    %v100 = vmul.f32 %v98, %v98
    %v101 = vmul.f32 %v99, %v99
    %v102 = vsel %vm82, %v100, 0.0
    %103 = vadd.xlane.f32.xlu0 %v102
    %v104 = vpop.xlane.xlu0 %103
    %v105 = vsel %vm82, %v101, 0.0
    %106 = vadd.xlane.f32.xlu0 %v105
    %v107 = vpop.xlane.xlu0 %106
    %v108 = vmul.f32 %v104, %v95
    %v109 = vmul.f32 %v107, %v95
    %v110 = vadd.f32 %v108, 1e-12
    %v111 = vadd.f32 %v109, 1e-12
    %v112 = vrsqrt.pop %v110
    %v113 = vmul.f32 %v112, %v110
    %v114 = vmul.f32 %v113, %v112
    %v115 = vmul.f32 0.5, %v114
    %v116 = vsub.f32 1.5, %v115
    %v117 = vmul.f32 %v112, %v116
    %vm118 = vweird.f32 %v110
    %vm119 = vweird.f32 %v112
    %vm120 = vmor %vm118, %vm119
    %v121 = vsel %vm120, %v112, %v117
    %v122 = vrsqrt.pop %v111
    %v123 = vmul.f32 %v122, %v111
    %v124 = vmul.f32 %v123, %v122
    %v125 = vmul.f32 0.5, %v124
    %v126 = vsub.f32 1.5, %v125
    %v127 = vmul.f32 %v122, %v126
    %vm128 = vweird.f32 %v111
    %vm129 = vweird.f32 %v122
    %vm130 = vmor %vm128, %vm129
    %v131 = vsel %vm130, %v122, %v127
    %v132 = vmul.f32 %v98, %v121
    %v133 = vmul.f32 %v99, %v131
    %v135 = vperm.slane %v80, 0
    %v137 = vmul.f32 %v132, %v135
    %v138 = vmul.f32 %v133, %v135
    %v140 = vperm.slane %v81, 0
    %v142 = vadd.f32 %v137, %v140
    %v143 = vadd.f32 %v138, %v140
    %v144 = vld [vmem:[%s1] sm:$0x1]
    %v145 = vld [vmem:[%s1 + $0x1] sm:$0x1]
    %v146 = vld [vmem:[%s4] sm:$0xff]
    %v147 = vld [vmem:[%s4 + $0x8] sm:$0xff]
    %v148 = vld [vmem:[%s4 + $0x10] sm:$0xff]
    %v149 = vld [vmem:[%s4 + $0x18] sm:$0xff]
    %v150 = vld [vmem:[%s4 + $0x20] sm:$0xff]
    %v151 = vld [vmem:[%s4 + $0x28] sm:$0xff]
    %v152 = vld [vmem:[%s4 + $0x30] sm:$0xff]
    %v153 = vld [vmem:[%s4 + $0x38] sm:$0xff]
    %v154 = vld [vmem:[%s4 + $0x40] sm:$0xff]
    %v155 = vld [vmem:[%s4 + $0x48] sm:$0xff]
    %v156 = vld [vmem:[%s4 + $0x50] sm:$0xff]
    %v157 = vld [vmem:[%s4 + $0x58] sm:$0xff]
    %v158 = vld [vmem:[%s4 + $0x60] sm:$0xff]
    %v159 = vld [vmem:[%s4 + $0x68] sm:$0xff]
    %v160 = vld [vmem:[%s4 + $0x70] sm:$0xff]
    %v161 = vld [vmem:[%s4 + $0x78] sm:$0xff]
    %v162 = vld [vmem:[%s5] sm:$0x1]
    %v163 = vld [vmem:[%s5 + $0x1] sm:$0x1]
    %v164 = vld [vmem:[%s5 + $0x2] sm:$0x1]
    %v165 = vld [vmem:[%s5 + $0x3] sm:$0x1]
    %v166 = vld [vmem:[%s6] sm:$0xff]
    %v167 = vld [vmem:[%s6 + $0x8] sm:$0xff]
    %v168 = vld [vmem:[%s6 + $0x10] sm:$0xff]
    %v169 = vld [vmem:[%s6 + $0x18] sm:$0xff]
    %v170 = vld [vmem:[%s6 + $0x20] sm:$0xff]
    %v171 = vld [vmem:[%s6 + $0x28] sm:$0xff]
    %v172 = vld [vmem:[%s6 + $0x30] sm:$0xff]
    %v173 = vld [vmem:[%s6 + $0x38] sm:$0xff]
    %v174 = vld [vmem:[%s6 + $0x40] sm:$0xff]
    %v175 = vld [vmem:[%s6 + $0x48] sm:$0xff]
    %v176 = vld [vmem:[%s6 + $0x50] sm:$0xff]
    %v177 = vld [vmem:[%s6 + $0x58] sm:$0xff]
    %v178 = vld [vmem:[%s6 + $0x60] sm:$0xff]
    %v179 = vld [vmem:[%s6 + $0x68] sm:$0xff]
    %v180 = vld [vmem:[%s6 + $0x70] sm:$0xff]
    %v181 = vld [vmem:[%s6 + $0x78] sm:$0xff]
    %v182 = vld [vmem:[%s7] sm:$0x1]
    %v183 = vld [vmem:[%s7 + $0x1] sm:$0x1]
    %v184 = vld [vmem:[%s7 + $0x2] sm:$0x1]
    %v185 = vld [vmem:[%s7 + $0x3] sm:$0x1]
    %v186 = vld [vmem:[%s8] sm:$0xff]
    %v187 = vld [vmem:[%s8 + $0x8] sm:$0xff]
    %v188 = vld [vmem:[%s8 + $0x10] sm:$0xff]
    %v189 = vld [vmem:[%s8 + $0x18] sm:$0xff]
    %v190 = vld [vmem:[%s8 + $0x20] sm:$0xff]
    %v191 = vld [vmem:[%s8 + $0x28] sm:$0xff]
    %v192 = vld [vmem:[%s8 + $0x30] sm:$0xff]
    %v193 = vld [vmem:[%s8 + $0x38] sm:$0xff]
    %v194 = vld [vmem:[%s8 + $0x40] sm:$0xff]
    %v195 = vld [vmem:[%s8 + $0x48] sm:$0xff]
    %v196 = vld [vmem:[%s8 + $0x50] sm:$0xff]
    %v197 = vld [vmem:[%s8 + $0x58] sm:$0xff]
    %v198 = vld [vmem:[%s8 + $0x60] sm:$0xff]
    %v199 = vld [vmem:[%s8 + $0x68] sm:$0xff]
    %v200 = vld [vmem:[%s8 + $0x70] sm:$0xff]
    %v201 = vld [vmem:[%s8 + $0x78] sm:$0xff]
    %v202 = vld [vmem:[%s9] sm:$0x1]
    %v203 = vld [vmem:[%s9 + $0x1] sm:$0x1]
    %v204 = vld [vmem:[%s9 + $0x2] sm:$0x1]
    %v205 = vld [vmem:[%s9 + $0x3] sm:$0x1]
    %v206 = vld [vmem:[%s10] sm:$0xff]
    %v207 = vld [vmem:[%s10 + $0x8] sm:$0xff]
    %v208 = vld [vmem:[%s10 + $0x10] sm:$0xff]
    %v209 = vld [vmem:[%s10 + $0x18] sm:$0xff]
    %v210 = vld [vmem:[%s10 + $0x20] sm:$0xff]
    %v211 = vld [vmem:[%s10 + $0x28] sm:$0xff]
    %v212 = vld [vmem:[%s10 + $0x30] sm:$0xff]
    %v213 = vld [vmem:[%s10 + $0x38] sm:$0xff]
    %v214 = vld [vmem:[%s11] sm:$0x1]
    %v215 = vld [vmem:[%s11 + $0x1] sm:$0x1]
    %v216 = vld [vmem:[%s12] sm:$0x1]
    %v217 = vld [vmem:[%s12 + $0x1] sm:$0x1]
    %v218 = vld [vmem:[%s13] sm:$0x1]
    %v219 = vld [vmem:[%s13 + $0x1] sm:$0x1]
    %v220 = vld [vmem:[%s14] sm:$0xff]
    %v221 = vld [vmem:[%s14 + $0x8] sm:$0xff]
    %v222 = vld [vmem:[%s14 + $0x10] sm:$0xff]
    %v223 = vld [vmem:[%s14 + $0x18] sm:$0xff]
    %v224 = vld [vmem:[%s14 + $0x20] sm:$0xff]
    %v225 = vld [vmem:[%s14 + $0x28] sm:$0xff]
    %v226 = vld [vmem:[%s14 + $0x30] sm:$0xff]
    %v227 = vld [vmem:[%s14 + $0x38] sm:$0xff]
    %v228 = vld [vmem:[%s15] sm:$0x1]
    %v229 = vld [vmem:[%s15 + $0x1] sm:$0x1]
    %v230 = vld [vmem:[%s16] sm:$0xff]
    %v231 = vld [vmem:[%s16 + $0x8] sm:$0xff]
    %v232 = vld [vmem:[%s16 + $0x10] sm:$0xff]
    %v233 = vld [vmem:[%s16 + $0x18] sm:$0xff]
    %v234 = vld [vmem:[%s16 + $0x20] sm:$0xff]
    %v235 = vld [vmem:[%s16 + $0x28] sm:$0xff]
    %v236 = vld [vmem:[%s16 + $0x30] sm:$0xff]
    %v237 = vld [vmem:[%s16 + $0x38] sm:$0xff]
    %v238 = vld [vmem:[%s16 + $0x40] sm:$0xff]
    %v239 = vld [vmem:[%s16 + $0x48] sm:$0xff]
    %v240 = vld [vmem:[%s16 + $0x50] sm:$0xff]
    %v241 = vld [vmem:[%s16 + $0x58] sm:$0xff]
    %v242 = vld [vmem:[%s16 + $0x60] sm:$0xff]
    %v243 = vld [vmem:[%s16 + $0x68] sm:$0xff]
    %v244 = vld [vmem:[%s16 + $0x70] sm:$0xff]
    %v245 = vld [vmem:[%s16 + $0x78] sm:$0xff]
    %v246 = vld [vmem:[%s17] sm:$0x1]
    %v247 = vld [vmem:[%s17 + $0x1] sm:$0x1]
    %v248 = vld [vmem:[%s18] sm:$0x1]
    %v249 = vld [vmem:[%s18 + $0x1] sm:$0x1]
    %v250 = vld [vmem:[%s19] sm:$0x1]
    %v251 = vld [vmem:[%s19 + $0x1] sm:$0x1]
    %v253 = vperm.slane %v162, 0
    %v256 = vsel %vm82, %v142, 0
    %v259 = vsel %vm82, %v143, 0
    %261 = vmatpush.msra.mxu0 0.0
    %262 = vmatpush.msra.mxu0 0.0
    %263 = vmatpush.msra.mxu0 0.0
    %264 = vmatpush.msra.mxu0 0.0
    %265 = vmatpush.msra.mxu0 0.0
    %266 = vmatpush.msra.mxu0 0.0
    %267 = vmatpush.msra.mxu0 0.0
    %268 = vmatpush.msra.mxu0 0.0
    %269 = vmatpush.msra.mxu0 0.0
    %270 = vmatpush.msra.mxu0 0.0
    %271 = vmatpush.msra.mxu0 0.0
    %272 = vmatpush.msra.mxu0 0.0
    %273 = vmatpush.msra.mxu0 %v149
    %274 = vmatpush.msra.mxu0 %v148
    %275 = vmatpush.msra.mxu0 %v147
    %276 = vmatpush.msra.mxu0 %v146
    %277 = vmatmul.f32.gmra.mxu0 %v256
    %v278 = vpop.f32.mrf.mxu0
    %v279 = vadd.f32 %v253, %v278
    %280 = vmatmul.f32.gmra.mxu0 %v259
    %v281 = vpop.f32.mrf.mxu0
    %v282 = vadd.f32 %v253, %v281
    %283 = vdwg.mxu0
    %v285 = vperm.slane %v182, 0
    %287 = vmatpush.msra.mxu0 0.0
    %288 = vmatpush.msra.mxu0 0.0
    %289 = vmatpush.msra.mxu0 0.0
    %290 = vmatpush.msra.mxu0 0.0
    %291 = vmatpush.msra.mxu0 0.0
    %292 = vmatpush.msra.mxu0 0.0
    %293 = vmatpush.msra.mxu0 0.0
    %294 = vmatpush.msra.mxu0 0.0
    %295 = vmatpush.msra.mxu0 0.0
    %296 = vmatpush.msra.mxu0 0.0
    %297 = vmatpush.msra.mxu0 0.0
    %298 = vmatpush.msra.mxu0 0.0
    %299 = vmatpush.msra.mxu0 %v169
    %300 = vmatpush.msra.mxu0 %v168
    %301 = vmatpush.msra.mxu0 %v167
    %302 = vmatpush.msra.mxu0 %v166
    %303 = vmatmul.f32.gmra.mxu0 %v256
    %v304 = vpop.f32.mrf.mxu0
    %v305 = vadd.f32 %v285, %v304
    %306 = vmatmul.f32.gmra.mxu0 %v259
    %v307 = vpop.f32.mrf.mxu0
    %v308 = vadd.f32 %v285, %v307
    %309 = vdwg.mxu0
    %v311 = vperm.slane %v202, 0
    %313 = vmatpush.msra.mxu0 0.0
    %314 = vmatpush.msra.mxu0 0.0
    %315 = vmatpush.msra.mxu0 0.0
    %316 = vmatpush.msra.mxu0 0.0
    %317 = vmatpush.msra.mxu0 0.0
    %318 = vmatpush.msra.mxu0 0.0
    %319 = vmatpush.msra.mxu0 0.0
    %320 = vmatpush.msra.mxu0 0.0
    %321 = vmatpush.msra.mxu0 0.0
    %322 = vmatpush.msra.mxu0 0.0
    %323 = vmatpush.msra.mxu0 0.0
    %324 = vmatpush.msra.mxu0 0.0
    %325 = vmatpush.msra.mxu0 %v189
    %326 = vmatpush.msra.mxu0 %v188
    %327 = vmatpush.msra.mxu0 %v187
    %328 = vmatpush.msra.mxu0 %v186
    %329 = vmatmul.f32.gmra.mxu0 %v256
    %v330 = vpop.f32.mrf.mxu0
    %v331 = vadd.f32 %v311, %v330
    %332 = vmatmul.f32.gmra.mxu0 %v259
    %v333 = vpop.f32.mrf.mxu0
    %v334 = vadd.f32 %v311, %v333
    %335 = vdwg.mxu0
    %vm336 = vcmask 130048
    %v338 = vsel %vm336, %v279, 0
    %v341 = vsel %vm336, %v305, 0
    %343 = vmatpush.xpose.msra.mxu0 0.0
    %344 = vmatpush.xpose.msra.mxu0 0.0
    %345 = vmatpush.xpose.msra.mxu0 0.0
    %346 = vmatpush.xpose.msra.mxu0 0.0
    %347 = vmatpush.xpose.msra.mxu0 0.0
    %348 = vmatpush.xpose.msra.mxu0 0.0
    %349 = vmatpush.xpose.msra.mxu0 0.0
    %350 = vmatpush.xpose.msra.mxu0 0.0
    %351 = vmatpush.xpose.msra.mxu0 0.0
    %352 = vmatpush.xpose.msra.mxu0 0.0
    %353 = vmatpush.xpose.msra.mxu0 0.0
    %354 = vmatpush.xpose.msra.mxu0 0.0
    %355 = vmatpush.xpose.msra.mxu0 0.0
    %356 = vmatpush.xpose.msra.mxu0 0.0
    %357 = vmatpush.xpose.msra.mxu0 0.0
    %358 = vmatpush.xpose.msra.mxu0 %v341
    %359 = vmatmul.f32.gmra.mxu0 %v338
    %v360 = vpop.f32.mrf.mxu0
    %v361 = vadd.f32 0.0, %v360
    %362 = vdwg.mxu0
    %v363 = vmul.f32 %v361, 0.25
    %v365 = vperm.slane %v144, 0
    %v367 = vadd.f32 %v363, %v365
    %vm368 = vcmask 64512
    %v369 = vsel %vm368, %v367, -inf
    %370 = vmax.xlane.f32.xlu0 %v369
    %v371 = vpop.xlane.xlu0 %370
    %v372 = vsub.f32 %v367, %v371
    %v373 = vmul.f32 %v372, 1.442695
    %v374 = vpow.pop %v373
    %v375 = vsel %vm368, %v374, 0.0
    %376 = vadd.xlane.f32.xlu0 %v375
    %v377 = vpop.xlane.xlu0 %376
    %v378 = vrcp.pop %v377
    %v379 = vmul.f32 %v374, %v378
    %v381 = vsel %vm368, %v379, 0
    %383 = vmatpush.msra.mxu0 0.0
    %384 = vmatpush.msra.mxu0 0.0
    %385 = vmatpush.msra.mxu0 0.0
    %386 = vmatpush.msra.mxu0 0.0
    %387 = vmatpush.msra.mxu0 0.0
    %388 = vmatpush.msra.mxu0 0.0
    %389 = vmatpush.msra.mxu0 0.0
    %390 = vmatpush.msra.mxu0 0.0
    %391 = vmatpush.msra.mxu0 0.0
    %392 = vmatpush.msra.mxu0 0.0
    %393 = vmatpush.msra.mxu0 0.0
    %394 = vmatpush.msra.mxu0 0.0
    %395 = vmatpush.msra.mxu0 0.0
    %396 = vmatpush.msra.mxu0 0.0
    %397 = vmatpush.msra.mxu0 0.0
    %398 = vmatpush.msra.mxu0 %v331
    %399 = vmatmul.f32.gmra.mxu0 %v381
    %v400 = vpop.f32.mrf.mxu0
    %v401 = vadd.f32 0.0, %v400
    %402 = vdwg.mxu0
    %v404 = vsel %vm336, %v282, 0
    %v407 = vsel %vm336, %v308, 0
    %409 = vmatpush.xpose.msra.mxu0 0.0
    %410 = vmatpush.xpose.msra.mxu0 0.0
    %411 = vmatpush.xpose.msra.mxu0 0.0
    %412 = vmatpush.xpose.msra.mxu0 0.0
    %413 = vmatpush.xpose.msra.mxu0 0.0
    %414 = vmatpush.xpose.msra.mxu0 0.0
    %415 = vmatpush.xpose.msra.mxu0 0.0
    %416 = vmatpush.xpose.msra.mxu0 0.0
    %417 = vmatpush.xpose.msra.mxu0 0.0
    %418 = vmatpush.xpose.msra.mxu0 0.0
    %419 = vmatpush.xpose.msra.mxu0 0.0
    %420 = vmatpush.xpose.msra.mxu0 0.0
    %421 = vmatpush.xpose.msra.mxu0 0.0
    %422 = vmatpush.xpose.msra.mxu0 0.0
    %423 = vmatpush.xpose.msra.mxu0 0.0
    %424 = vmatpush.xpose.msra.mxu0 %v407
    %425 = vmatmul.f32.gmra.mxu0 %v404
    %v426 = vpop.f32.mrf.mxu0
    %v427 = vadd.f32 0.0, %v426
    %428 = vdwg.mxu0
    %v429 = vmul.f32 %v427, 0.25
    %v431 = vperm.slane %v145, 0
    %v433 = vadd.f32 %v429, %v431
    %v434 = vsel %vm368, %v433, -inf
    %435 = vmax.xlane.f32.xlu0 %v434
    %v436 = vpop.xlane.xlu0 %435
    %v437 = vsub.f32 %v433, %v436
    %v438 = vmul.f32 %v437, 1.442695
    %v439 = vpow.pop %v438
    %v440 = vsel %vm368, %v439, 0.0
    %441 = vadd.xlane.f32.xlu0 %v440
    %v442 = vpop.xlane.xlu0 %441
    %v443 = vrcp.pop %v442
    %v444 = vmul.f32 %v439, %v443
    %v446 = vsel %vm368, %v444, 0
    %448 = vmatpush.msra.mxu0 0.0
    %449 = vmatpush.msra.mxu0 0.0
    %450 = vmatpush.msra.mxu0 0.0
    %451 = vmatpush.msra.mxu0 0.0
    %452 = vmatpush.msra.mxu0 0.0
    %453 = vmatpush.msra.mxu0 0.0
    %454 = vmatpush.msra.mxu0 0.0
    %455 = vmatpush.msra.mxu0 0.0
    %456 = vmatpush.msra.mxu0 0.0
    %457 = vmatpush.msra.mxu0 0.0
    %458 = vmatpush.msra.mxu0 0.0
    %459 = vmatpush.msra.mxu0 0.0
    %460 = vmatpush.msra.mxu0 0.0
    %461 = vmatpush.msra.mxu0 0.0
    %462 = vmatpush.msra.mxu0 0.0
    %463 = vmatpush.msra.mxu0 %v334
    %464 = vmatmul.f32.gmra.mxu0 %v446
    %v465 = vpop.f32.mrf.mxu0
    %v466 = vadd.f32 0.0, %v465
    %467 = vdwg.mxu0
    %v469 = vperm.slane %v163, 0
    %471 = vmatpush.msra.mxu0 0.0
    %472 = vmatpush.msra.mxu0 0.0
    %473 = vmatpush.msra.mxu0 0.0
    %474 = vmatpush.msra.mxu0 0.0
    %475 = vmatpush.msra.mxu0 0.0
    %476 = vmatpush.msra.mxu0 0.0
    %477 = vmatpush.msra.mxu0 0.0
    %478 = vmatpush.msra.mxu0 0.0
    %479 = vmatpush.msra.mxu0 0.0
    %480 = vmatpush.msra.mxu0 0.0
    %481 = vmatpush.msra.mxu0 0.0
    %482 = vmatpush.msra.mxu0 0.0
    %483 = vmatpush.msra.mxu0 %v153
    %484 = vmatpush.msra.mxu0 %v152
    %485 = vmatpush.msra.mxu0 %v151
    %486 = vmatpush.msra.mxu0 %v150
    %487 = vmatmul.f32.gmra.mxu0 %v256
    %v488 = vpop.f32.mrf.mxu0
    %v489 = vadd.f32 %v469, %v488
    %490 = vmatmul.f32.gmra.mxu0 %v259
    %v491 = vpop.f32.mrf.mxu0
    %v492 = vadd.f32 %v469, %v491
    %493 = vdwg.mxu0
    %v495 = vperm.slane %v183, 0
    %497 = vmatpush.msra.mxu0 0.0
    %498 = vmatpush.msra.mxu0 0.0
    %499 = vmatpush.msra.mxu0 0.0
    %500 = vmatpush.msra.mxu0 0.0
    %501 = vmatpush.msra.mxu0 0.0
    %502 = vmatpush.msra.mxu0 0.0
    %503 = vmatpush.msra.mxu0 0.0
    %504 = vmatpush.msra.mxu0 0.0
    %505 = vmatpush.msra.mxu0 0.0
    %506 = vmatpush.msra.mxu0 0.0
    %507 = vmatpush.msra.mxu0 0.0
    %508 = vmatpush.msra.mxu0 0.0
    %509 = vmatpush.msra.mxu0 %v173
    %510 = vmatpush.msra.mxu0 %v172
    %511 = vmatpush.msra.mxu0 %v171
    %512 = vmatpush.msra.mxu0 %v170
    %513 = vmatmul.f32.gmra.mxu0 %v256
    %v514 = vpop.f32.mrf.mxu0
    %v515 = vadd.f32 %v495, %v514
    %516 = vmatmul.f32.gmra.mxu0 %v259
    %v517 = vpop.f32.mrf.mxu0
    %v518 = vadd.f32 %v495, %v517
    %519 = vdwg.mxu0
    %v521 = vperm.slane %v203, 0
    %523 = vmatpush.msra.mxu0 0.0
    %524 = vmatpush.msra.mxu0 0.0
    %525 = vmatpush.msra.mxu0 0.0
    %526 = vmatpush.msra.mxu0 0.0
    %527 = vmatpush.msra.mxu0 0.0
    %528 = vmatpush.msra.mxu0 0.0
    %529 = vmatpush.msra.mxu0 0.0
    %530 = vmatpush.msra.mxu0 0.0
    %531 = vmatpush.msra.mxu0 0.0
    %532 = vmatpush.msra.mxu0 0.0
    %533 = vmatpush.msra.mxu0 0.0
    %534 = vmatpush.msra.mxu0 0.0
    %535 = vmatpush.msra.mxu0 %v193
    %536 = vmatpush.msra.mxu0 %v192
    %537 = vmatpush.msra.mxu0 %v191
    %538 = vmatpush.msra.mxu0 %v190
    %539 = vmatmul.f32.gmra.mxu0 %v256
    %v540 = vpop.f32.mrf.mxu0
    %v541 = vadd.f32 %v521, %v540
    %542 = vmatmul.f32.gmra.mxu0 %v259
    %v543 = vpop.f32.mrf.mxu0
    %v544 = vadd.f32 %v521, %v543
    %545 = vdwg.mxu0
    %v547 = vsel %vm336, %v489, 0
    %v550 = vsel %vm336, %v515, 0
    %552 = vmatpush.xpose.msra.mxu0 0.0
    %553 = vmatpush.xpose.msra.mxu0 0.0
    %554 = vmatpush.xpose.msra.mxu0 0.0
    %555 = vmatpush.xpose.msra.mxu0 0.0
    %556 = vmatpush.xpose.msra.mxu0 0.0
    %557 = vmatpush.xpose.msra.mxu0 0.0
    %558 = vmatpush.xpose.msra.mxu0 0.0
    %559 = vmatpush.xpose.msra.mxu0 0.0
    %560 = vmatpush.xpose.msra.mxu0 0.0
    %561 = vmatpush.xpose.msra.mxu0 0.0
    %562 = vmatpush.xpose.msra.mxu0 0.0
    %563 = vmatpush.xpose.msra.mxu0 0.0
    %564 = vmatpush.xpose.msra.mxu0 0.0
    %565 = vmatpush.xpose.msra.mxu0 0.0
    %566 = vmatpush.xpose.msra.mxu0 0.0
    %567 = vmatpush.xpose.msra.mxu0 %v550
    %568 = vmatmul.f32.gmra.mxu0 %v547
    %v569 = vpop.f32.mrf.mxu0
    %v570 = vadd.f32 0.0, %v569
    %571 = vdwg.mxu0
    %v572 = vmul.f32 %v570, 0.25
    %v573 = vadd.f32 %v572, %v365
    %v574 = vsel %vm368, %v573, -inf
    %575 = vmax.xlane.f32.xlu0 %v574
    %v576 = vpop.xlane.xlu0 %575
    %v577 = vsub.f32 %v573, %v576
    %v578 = vmul.f32 %v577, 1.442695
    %v579 = vpow.pop %v578
    %v580 = vsel %vm368, %v579, 0.0
    %581 = vadd.xlane.f32.xlu0 %v580
    %v582 = vpop.xlane.xlu0 %581
    %v583 = vrcp.pop %v582
    %v584 = vmul.f32 %v579, %v583
    %v586 = vsel %vm368, %v584, 0
    %588 = vmatpush.msra.mxu0 0.0
    %589 = vmatpush.msra.mxu0 0.0
    %590 = vmatpush.msra.mxu0 0.0
    %591 = vmatpush.msra.mxu0 0.0
    %592 = vmatpush.msra.mxu0 0.0
    %593 = vmatpush.msra.mxu0 0.0
    %594 = vmatpush.msra.mxu0 0.0
    %595 = vmatpush.msra.mxu0 0.0
    %596 = vmatpush.msra.mxu0 0.0
    %597 = vmatpush.msra.mxu0 0.0
    %598 = vmatpush.msra.mxu0 0.0
    %599 = vmatpush.msra.mxu0 0.0
    %600 = vmatpush.msra.mxu0 0.0
    %601 = vmatpush.msra.mxu0 0.0
    %602 = vmatpush.msra.mxu0 0.0
    %603 = vmatpush.msra.mxu0 %v541
    %604 = vmatmul.f32.gmra.mxu0 %v586
    %v605 = vpop.f32.mrf.mxu0
    %v606 = vadd.f32 0.0, %v605
    %607 = vdwg.mxu0
    %v609 = vsel %vm336, %v492, 0
    %v612 = vsel %vm336, %v518, 0
    %614 = vmatpush.xpose.msra.mxu0 0.0
    %615 = vmatpush.xpose.msra.mxu0 0.0
    %616 = vmatpush.xpose.msra.mxu0 0.0
    %617 = vmatpush.xpose.msra.mxu0 0.0
    %618 = vmatpush.xpose.msra.mxu0 0.0
    %619 = vmatpush.xpose.msra.mxu0 0.0
    %620 = vmatpush.xpose.msra.mxu0 0.0
    %621 = vmatpush.xpose.msra.mxu0 0.0
    %622 = vmatpush.xpose.msra.mxu0 0.0
    %623 = vmatpush.xpose.msra.mxu0 0.0
    %624 = vmatpush.xpose.msra.mxu0 0.0
    %625 = vmatpush.xpose.msra.mxu0 0.0
    %626 = vmatpush.xpose.msra.mxu0 0.0
    %627 = vmatpush.xpose.msra.mxu0 0.0
    %628 = vmatpush.xpose.msra.mxu0 0.0
    %629 = vmatpush.xpose.msra.mxu0 %v612
    %630 = vmatmul.f32.gmra.mxu0 %v609
    %v631 = vpop.f32.mrf.mxu0
    %v632 = vadd.f32 0.0, %v631
    %633 = vdwg.mxu0
    %v634 = vmul.f32 %v632, 0.25
    %v635 = vadd.f32 %v634, %v431
    %v636 = vsel %vm368, %v635, -inf
    %637 = vmax.xlane.f32.xlu0 %v636
    %v638 = vpop.xlane.xlu0 %637
    %v639 = vsub.f32 %v635, %v638
    %v640 = vmul.f32 %v639, 1.442695
    %v641 = vpow.pop %v640
    %v642 = vsel %vm368, %v641, 0.0
    %643 = vadd.xlane.f32.xlu0 %v642
    %v644 = vpop.xlane.xlu0 %643
    %v645 = vrcp.pop %v644
    %v646 = vmul.f32 %v641, %v645
    %v648 = vsel %vm368, %v646, 0
    %650 = vmatpush.msra.mxu0 0.0
    %651 = vmatpush.msra.mxu0 0.0
    %652 = vmatpush.msra.mxu0 0.0
    %653 = vmatpush.msra.mxu0 0.0
    %654 = vmatpush.msra.mxu0 0.0
    %655 = vmatpush.msra.mxu0 0.0
    %656 = vmatpush.msra.mxu0 0.0
    %657 = vmatpush.msra.mxu0 0.0
    %658 = vmatpush.msra.mxu0 0.0
    %659 = vmatpush.msra.mxu0 0.0
    %660 = vmatpush.msra.mxu0 0.0
    %661 = vmatpush.msra.mxu0 0.0
    %662 = vmatpush.msra.mxu0 0.0
    %663 = vmatpush.msra.mxu0 0.0
    %664 = vmatpush.msra.mxu0 0.0
    %665 = vmatpush.msra.mxu0 %v544
    %666 = vmatmul.f32.gmra.mxu0 %v648
    %v667 = vpop.f32.mrf.mxu0
    %v668 = vadd.f32 0.0, %v667
    %669 = vdwg.mxu0
    %v671 = vsel %vm336, %v606, 0
    %v674 = vsel %vm336, %v668, 0
    %676 = vmatpush.msra.mxu0 0.0
    %677 = vmatpush.msra.mxu0 0.0
    %678 = vmatpush.msra.mxu0 0.0
    %679 = vmatpush.msra.mxu0 0.0
    %680 = vmatpush.msra.mxu0 0.0
    %681 = vmatpush.msra.mxu0 0.0
    %682 = vmatpush.msra.mxu0 0.0
    %683 = vmatpush.msra.mxu0 0.0
    %684 = vmatpush.msra.mxu0 0.0
    %685 = vmatpush.msra.mxu0 0.0
    %686 = vmatpush.msra.mxu0 0.0
    %687 = vmatpush.msra.mxu0 0.0
    %688 = vmatpush.msra.mxu0 0.0
    %689 = vmatpush.msra.mxu0 0.0
    %690 = vmatpush.msra.mxu0 %v209
    %691 = vmatpush.msra.mxu0 %v208
    %692 = vmatmul.f32.gmra.mxu0 %v671
    %v693 = vpop.f32.mrf.mxu0
    %v694 = vadd.f32 0.0, %v693
    %695 = vmatmul.f32.gmra.mxu0 %v674
    %v696 = vpop.f32.mrf.mxu0
    %v697 = vadd.f32 0.0, %v696
    %698 = vdwg.mxu0
    %v700 = vsel %vm336, %v401, 0
    %v703 = vsel %vm336, %v466, 0
    %705 = vmatpush.msra.mxu0 0.0
    %706 = vmatpush.msra.mxu0 0.0
    %707 = vmatpush.msra.mxu0 0.0
    %708 = vmatpush.msra.mxu0 0.0
    %709 = vmatpush.msra.mxu0 0.0
    %710 = vmatpush.msra.mxu0 0.0
    %711 = vmatpush.msra.mxu0 0.0
    %712 = vmatpush.msra.mxu0 0.0
    %713 = vmatpush.msra.mxu0 0.0
    %714 = vmatpush.msra.mxu0 0.0
    %715 = vmatpush.msra.mxu0 0.0
    %716 = vmatpush.msra.mxu0 0.0
    %717 = vmatpush.msra.mxu0 0.0
    %718 = vmatpush.msra.mxu0 0.0
    %719 = vmatpush.msra.mxu0 %v207
    %720 = vmatpush.msra.mxu0 %v206
    %721 = vmatmul.f32.gmra.mxu0 %v700
    %v722 = vpop.f32.mrf.mxu0
    %v723 = vadd.f32 %v694, %v722
    %724 = vmatmul.f32.gmra.mxu0 %v703
    %v725 = vpop.f32.mrf.mxu0
    %v726 = vadd.f32 %v697, %v725
    %727 = vdwg.mxu0
    %v729 = vperm.slane %v214, 0
    %v731 = vadd.f32 %v723, %v729
    %v732 = vadd.f32 %v726, %v729
    %v733 = vadd.f32 %v142, %v731
    %v734 = vadd.f32 %v143, %v732
    %v735 = vsel %vm82, %v733, 0.0
    %736 = vadd.xlane.f32.xlu0 %v735
    %v737 = vpop.xlane.xlu0 %736
    %v738 = vsel %vm82, %v734, 0.0
    %739 = vadd.xlane.f32.xlu0 %v738
    %v740 = vpop.xlane.xlu0 %739
    %v741 = vmul.f32 %v737, %v95
    %v742 = vmul.f32 %v740, %v95
    %v743 = vsub.f32 %v733, %v741
    %v744 = vsub.f32 %v734, %v742
    %v745 = vmul.f32 %v743, %v743
    %v746 = vmul.f32 %v744, %v744
    %v747 = vsel %vm82, %v745, 0.0
    %748 = vadd.xlane.f32.xlu0 %v747
    %v749 = vpop.xlane.xlu0 %748
    %v750 = vsel %vm82, %v746, 0.0
    %751 = vadd.xlane.f32.xlu0 %v750
    %v752 = vpop.xlane.xlu0 %751
    %v753 = vmul.f32 %v749, %v95
    %v754 = vmul.f32 %v752, %v95
    %v755 = vadd.f32 %v753, 1e-12
    %v756 = vadd.f32 %v754, 1e-12
    %v757 = vrsqrt.pop %v755
    %v758 = vmul.f32 %v757, %v755
    %v759 = vmul.f32 %v758, %v757
    %v760 = vmul.f32 0.5, %v759
    %v761 = vsub.f32 1.5, %v760
    %v762 = vmul.f32 %v757, %v761
    %vm763 = vweird.f32 %v755
    %vm764 = vweird.f32 %v757
    %vm765 = vmor %vm763, %vm764
    %v766 = vsel %vm765, %v757, %v762
    %v767 = vrsqrt.pop %v756
    %v768 = vmul.f32 %v767, %v756
    %v769 = vmul.f32 %v768, %v767
    %v770 = vmul.f32 0.5, %v769
    %v771 = vsub.f32 1.5, %v770
    %v772 = vmul.f32 %v767, %v771
    %vm773 = vweird.f32 %v756
    %vm774 = vweird.f32 %v767
    %vm775 = vmor %vm773, %vm774
    %v776 = vsel %vm775, %v767, %v772
    %v777 = vmul.f32 %v743, %v766
    %v778 = vmul.f32 %v744, %v776
    %v780 = vperm.slane %v216, 0
    %v782 = vmul.f32 %v777, %v780
    %v783 = vmul.f32 %v778, %v780
    %v785 = vperm.slane %v218, 0
    %v787 = vadd.f32 %v782, %v785
    %v788 = vadd.f32 %v783, %v785
    %v790 = vperm.slane %v228, 0
    %v793 = vsel %vm82, %v787, 0
    %v796 = vsel %vm82, %v788, 0
    %798 = vmatpush.msra.mxu0 0.0
    %799 = vmatpush.msra.mxu0 0.0
    %800 = vmatpush.msra.mxu0 0.0
    %801 = vmatpush.msra.mxu0 0.0
    %802 = vmatpush.msra.mxu0 0.0
    %803 = vmatpush.msra.mxu0 0.0
    %804 = vmatpush.msra.mxu0 0.0
    %805 = vmatpush.msra.mxu0 0.0
    %806 = vmatpush.msra.mxu0 0.0
    %807 = vmatpush.msra.mxu0 0.0
    %808 = vmatpush.msra.mxu0 0.0
    %809 = vmatpush.msra.mxu0 0.0
    %810 = vmatpush.msra.mxu0 %v223
    %811 = vmatpush.msra.mxu0 %v222
    %812 = vmatpush.msra.mxu0 %v221
    %813 = vmatpush.msra.mxu0 %v220
    %814 = vmatmul.f32.gmra.mxu0 %v793
    %v815 = vpop.f32.mrf.mxu0
    %v816 = vadd.f32 %v790, %v815
    %817 = vmatmul.f32.gmra.mxu0 %v796
    %v818 = vpop.f32.mrf.mxu0
    %v819 = vadd.f32 %v790, %v818
    %820 = vdwg.mxu0
    %v821 = vmul.f32 %v816, %v816
    %v822 = vmul.f32 %v819, %v819
    %v823 = vmul.f32 %v816, %v821
    %v824 = vmul.f32 %v819, %v822
    %v825 = vmul.f32 %v823, 0.044715
    %v826 = vmul.f32 %v824, 0.044715
    %v827 = vadd.f32 %v816, %v825
    %v828 = vadd.f32 %v819, %v826
    %v829 = vmul.f32 %v827, 0.7978846
    %v830 = vmul.f32 %v828, 0.7978846
    %v831 = vtanh.pop %v829
    %v832 = vtanh.pop %v830
    %v833 = vadd.f32 %v831, 1.0
    %v834 = vadd.f32 %v832, 1.0
    %v835 = vmul.f32 %v833, 0.5
    %v836 = vmul.f32 %v834, 0.5
    %v837 = vmul.f32 %v816, %v835
    %v838 = vmul.f32 %v819, %v836
    %v840 = vperm.slane %v246, 0
    %vm842 = vcmask 523264
    %v844 = vsel %vm842, %v837, 0
    %v847 = vsel %vm842, %v838, 0
    %849 = vmatpush.msra.mxu0 0.0
    %850 = vmatpush.msra.mxu0 0.0
    %851 = vmatpush.msra.mxu0 0.0
    %852 = vmatpush.msra.mxu0 0.0
    %853 = vmatpush.msra.mxu0 0.0
    %854 = vmatpush.msra.mxu0 0.0
    %855 = vmatpush.msra.mxu0 0.0
    %856 = vmatpush.msra.mxu0 0.0
    %857 = vmatpush.msra.mxu0 %v237
    %858 = vmatpush.msra.mxu0 %v236
    %859 = vmatpush.msra.mxu0 %v235
    %860 = vmatpush.msra.mxu0 %v234
    %861 = vmatpush.msra.mxu0 %v233
    %862 = vmatpush.msra.mxu0 %v232
    %863 = vmatpush.msra.mxu0 %v231
    %864 = vmatpush.msra.mxu0 %v230
    %865 = vmatmul.f32.gmra.mxu0 %v844
    %v866 = vpop.f32.mrf.mxu0
    %v867 = vadd.f32 %v840, %v866
    %868 = vmatmul.f32.gmra.mxu0 %v847
    %v869 = vpop.f32.mrf.mxu0
    %v870 = vadd.f32 %v840, %v869
    %871 = vdwg.mxu0
    %v872 = vadd.f32 %v787, %v867
    %v873 = vadd.f32 %v788, %v870
    %v874 = vsel %vm82, %v872, 0.0
    %875 = vadd.xlane.f32.xlu0 %v874
    %v876 = vpop.xlane.xlu0 %875
    %v877 = vsel %vm82, %v873, 0.0
    %878 = vadd.xlane.f32.xlu0 %v877
    %v879 = vpop.xlane.xlu0 %878
    %v880 = vmul.f32 %v876, %v95
    %v881 = vmul.f32 %v879, %v95
    %v882 = vsub.f32 %v872, %v880
    %v883 = vsub.f32 %v873, %v881
    %v884 = vmul.f32 %v882, %v882
    %v885 = vmul.f32 %v883, %v883
    %v886 = vsel %vm82, %v884, 0.0
    %887 = vadd.xlane.f32.xlu0 %v886
    %v888 = vpop.xlane.xlu0 %887
    %v889 = vsel %vm82, %v885, 0.0
    %890 = vadd.xlane.f32.xlu0 %v889
    %v891 = vpop.xlane.xlu0 %890
    %v892 = vmul.f32 %v888, %v95
    %v893 = vmul.f32 %v891, %v95
    %v894 = vadd.f32 %v892, 1e-12
    %v895 = vadd.f32 %v893, 1e-12
    %v896 = vrsqrt.pop %v894
    %v897 = vmul.f32 %v896, %v894
    %v898 = vmul.f32 %v897, %v896
    %v899 = vmul.f32 0.5, %v898
    %v900 = vsub.f32 1.5, %v899
    %v901 = vmul.f32 %v896, %v900
    %vm902 = vweird.f32 %v894
    %vm903 = vweird.f32 %v896
    %vm904 = vmor %vm902, %vm903
    %v905 = vsel %vm904, %v896, %v901
    %v906 = vrsqrt.pop %v895
    %v907 = vmul.f32 %v906, %v895
    %v908 = vmul.f32 %v907, %v906
    %v909 = vmul.f32 0.5, %v908
    %v910 = vsub.f32 1.5, %v909
    %v911 = vmul.f32 %v906, %v910
    %vm912 = vweird.f32 %v895
    %vm913 = vweird.f32 %v906
    %vm914 = vmor %vm912, %vm913
    %v915 = vsel %vm914, %v906, %v911
    %v916 = vmul.f32 %v882, %v905
    %v917 = vmul.f32 %v883, %v915
    %v919 = vperm.slane %v248, 0
    %v921 = vmul.f32 %v916, %v919
    %v922 = vmul.f32 %v917, %v919
    %v924 = vperm.slane %v250, 0
    %v926 = vadd.f32 %v921, %v924
    %v927 = vadd.f32 %v922, %v924
    %v929 = vperm.slane %v164, 0
    %v932 = vsel %vm82, %v926, 0
    %v935 = vsel %vm82, %v927, 0
    %937 = vmatpush.msra.mxu0 0.0
    %938 = vmatpush.msra.mxu0 0.0
    %939 = vmatpush.msra.mxu0 0.0
    %940 = vmatpush.msra.mxu0 0.0
    %941 = vmatpush.msra.mxu0 0.0
    %942 = vmatpush.msra.mxu0 0.0
    %943 = vmatpush.msra.mxu0 0.0
    %944 = vmatpush.msra.mxu0 0.0
    %945 = vmatpush.msra.mxu0 0.0
    %946 = vmatpush.msra.mxu0 0.0
    %947 = vmatpush.msra.mxu0 0.0
    %948 = vmatpush.msra.mxu0 0.0
    %949 = vmatpush.msra.mxu0 %v157
    %950 = vmatpush.msra.mxu0 %v156
    %951 = vmatpush.msra.mxu0 %v155
    %952 = vmatpush.msra.mxu0 %v154
    %953 = vmatmul.f32.gmra.mxu0 %v932
    %v954 = vpop.f32.mrf.mxu0
    %v955 = vadd.f32 %v929, %v954
    %956 = vmatmul.f32.gmra.mxu0 %v935
    %v957 = vpop.f32.mrf.mxu0
    %v958 = vadd.f32 %v929, %v957
    %959 = vdwg.mxu0
    %v961 = vperm.slane %v184, 0
    %963 = vmatpush.msra.mxu0 0.0
    %964 = vmatpush.msra.mxu0 0.0
    %965 = vmatpush.msra.mxu0 0.0
    %966 = vmatpush.msra.mxu0 0.0
    %967 = vmatpush.msra.mxu0 0.0
    %968 = vmatpush.msra.mxu0 0.0
    %969 = vmatpush.msra.mxu0 0.0
    %970 = vmatpush.msra.mxu0 0.0
    %971 = vmatpush.msra.mxu0 0.0
    %972 = vmatpush.msra.mxu0 0.0
    %973 = vmatpush.msra.mxu0 0.0
    %974 = vmatpush.msra.mxu0 0.0
    %975 = vmatpush.msra.mxu0 %v177
    %976 = vmatpush.msra.mxu0 %v176
    %977 = vmatpush.msra.mxu0 %v175
    %978 = vmatpush.msra.mxu0 %v174
    %979 = vmatmul.f32.gmra.mxu0 %v932
    %v980 = vpop.f32.mrf.mxu0
    %v981 = vadd.f32 %v961, %v980
    %982 = vmatmul.f32.gmra.mxu0 %v935
    %v983 = vpop.f32.mrf.mxu0
    %v984 = vadd.f32 %v961, %v983
    %985 = vdwg.mxu0
    %v987 = vperm.slane %v204, 0
    %989 = vmatpush.msra.mxu0 0.0
    %990 = vmatpush.msra.mxu0 0.0
    %991 = vmatpush.msra.mxu0 0.0
    %992 = vmatpush.msra.mxu0 0.0
    %993 = vmatpush.msra.mxu0 0.0
    %994 = vmatpush.msra.mxu0 0.0
    %995 = vmatpush.msra.mxu0 0.0
    %996 = vmatpush.msra.mxu0 0.0
    %997 = vmatpush.msra.mxu0 0.0
    %998 = vmatpush.msra.mxu0 0.0
    %999 = vmatpush.msra.mxu0 0.0
    %1000 = vmatpush.msra.mxu0 0.0
    %1001 = vmatpush.msra.mxu0 %v197
    %1002 = vmatpush.msra.mxu0 %v196
    %1003 = vmatpush.msra.mxu0 %v195
    %1004 = vmatpush.msra.mxu0 %v194
    %1005 = vmatmul.f32.gmra.mxu0 %v932
    %v1006 = vpop.f32.mrf.mxu0
    %v1007 = vadd.f32 %v987, %v1006
    %1008 = vmatmul.f32.gmra.mxu0 %v935
    %v1009 = vpop.f32.mrf.mxu0
    %v1010 = vadd.f32 %v987, %v1009
    %1011 = vdwg.mxu0
    %v1013 = vsel %vm336, %v955, 0
    %v1016 = vsel %vm336, %v981, 0
    %1018 = vmatpush.xpose.msra.mxu0 0.0
    %1019 = vmatpush.xpose.msra.mxu0 0.0
    %1020 = vmatpush.xpose.msra.mxu0 0.0
    %1021 = vmatpush.xpose.msra.mxu0 0.0
    %1022 = vmatpush.xpose.msra.mxu0 0.0
    %1023 = vmatpush.xpose.msra.mxu0 0.0
    %1024 = vmatpush.xpose.msra.mxu0 0.0
    %1025 = vmatpush.xpose.msra.mxu0 0.0
    %1026 = vmatpush.xpose.msra.mxu0 0.0
    %1027 = vmatpush.xpose.msra.mxu0 0.0
    %1028 = vmatpush.xpose.msra.mxu0 0.0
    %1029 = vmatpush.xpose.msra.mxu0 0.0
    %1030 = vmatpush.xpose.msra.mxu0 0.0
    %1031 = vmatpush.xpose.msra.mxu0 0.0
    %1032 = vmatpush.xpose.msra.mxu0 0.0
    %1033 = vmatpush.xpose.msra.mxu0 %v1016
    %1034 = vmatmul.f32.gmra.mxu0 %v1013
    %v1035 = vpop.f32.mrf.mxu0
    %v1036 = vadd.f32 0.0, %v1035
    %1037 = vdwg.mxu0
    %v1038 = vmul.f32 %v1036, 0.25
    %v1039 = vadd.f32 %v1038, %v365
    %v1040 = vsel %vm368, %v1039, -inf
    %1041 = vmax.xlane.f32.xlu0 %v1040
    %v1042 = vpop.xlane.xlu0 %1041
    %v1043 = vsub.f32 %v1039, %v1042
    %v1044 = vmul.f32 %v1043, 1.442695
    %v1045 = vpow.pop %v1044
    %v1046 = vsel %vm368, %v1045, 0.0
    %1047 = vadd.xlane.f32.xlu0 %v1046
    %v1048 = vpop.xlane.xlu0 %1047
    %v1049 = vrcp.pop %v1048
    %v1050 = vmul.f32 %v1045, %v1049
    %v1052 = vsel %vm368, %v1050, 0
    %1054 = vmatpush.msra.mxu0 0.0
    %1055 = vmatpush.msra.mxu0 0.0
    %1056 = vmatpush.msra.mxu0 0.0
    %1057 = vmatpush.msra.mxu0 0.0
    %1058 = vmatpush.msra.mxu0 0.0
    %1059 = vmatpush.msra.mxu0 0.0
    %1060 = vmatpush.msra.mxu0 0.0
    %1061 = vmatpush.msra.mxu0 0.0
    %1062 = vmatpush.msra.mxu0 0.0
    %1063 = vmatpush.msra.mxu0 0.0
    %1064 = vmatpush.msra.mxu0 0.0
    %1065 = vmatpush.msra.mxu0 0.0
    %1066 = vmatpush.msra.mxu0 0.0
    %1067 = vmatpush.msra.mxu0 0.0
    %1068 = vmatpush.msra.mxu0 0.0
    %1069 = vmatpush.msra.mxu0 %v1007
    %1070 = vmatmul.f32.gmra.mxu0 %v1052
    %v1071 = vpop.f32.mrf.mxu0
    %v1072 = vadd.f32 0.0, %v1071
    %1073 = vdwg.mxu0
    %v1075 = vsel %vm336, %v958, 0
    %v1078 = vsel %vm336, %v984, 0
    %1080 = vmatpush.xpose.msra.mxu0 0.0
    %1081 = vmatpush.xpose.msra.mxu0 0.0
    %1082 = vmatpush.xpose.msra.mxu0 0.0
    %1083 = vmatpush.xpose.msra.mxu0 0.0
    %1084 = vmatpush.xpose.msra.mxu0 0.0
    %1085 = vmatpush.xpose.msra.mxu0 0.0
    %1086 = vmatpush.xpose.msra.mxu0 0.0
    %1087 = vmatpush.xpose.msra.mxu0 0.0
    %1088 = vmatpush.xpose.msra.mxu0 0.0
    %1089 = vmatpush.xpose.msra.mxu0 0.0
    %1090 = vmatpush.xpose.msra.mxu0 0.0
    %1091 = vmatpush.xpose.msra.mxu0 0.0
    %1092 = vmatpush.xpose.msra.mxu0 0.0
    %1093 = vmatpush.xpose.msra.mxu0 0.0
    %1094 = vmatpush.xpose.msra.mxu0 0.0
    %1095 = vmatpush.xpose.msra.mxu0 %v1078
    %1096 = vmatmul.f32.gmra.mxu0 %v1075
    %v1097 = vpop.f32.mrf.mxu0
    %v1098 = vadd.f32 0.0, %v1097
    %1099 = vdwg.mxu0
    %v1100 = vmul.f32 %v1098, 0.25
    %v1101 = vadd.f32 %v1100, %v431
    %v1102 = vsel %vm368, %v1101, -inf
    %1103 = vmax.xlane.f32.xlu0 %v1102
    %v1104 = vpop.xlane.xlu0 %1103
    %v1105 = vsub.f32 %v1101, %v1104
    %v1106 = vmul.f32 %v1105, 1.442695
    %v1107 = vpow.pop %v1106
    %v1108 = vsel %vm368, %v1107, 0.0
    %1109 = vadd.xlane.f32.xlu0 %v1108
    %v1110 = vpop.xlane.xlu0 %1109
    %v1111 = vrcp.pop %v1110
    %v1112 = vmul.f32 %v1107, %v1111
    %v1114 = vsel %vm368, %v1112, 0
    %1116 = vmatpush.msra.mxu0 0.0
    %1117 = vmatpush.msra.mxu0 0.0
    %1118 = vmatpush.msra.mxu0 0.0
    %1119 = vmatpush.msra.mxu0 0.0
    %1120 = vmatpush.msra.mxu0 0.0
    %1121 = vmatpush.msra.mxu0 0.0
    %1122 = vmatpush.msra.mxu0 0.0
    %1123 = vmatpush.msra.mxu0 0.0
    %1124 = vmatpush.msra.mxu0 0.0
    %1125 = vmatpush.msra.mxu0 0.0
    %1126 = vmatpush.msra.mxu0 0.0
    %1127 = vmatpush.msra.mxu0 0.0
    %1128 = vmatpush.msra.mxu0 0.0
    %1129 = vmatpush.msra.mxu0 0.0
    %1130 = vmatpush.msra.mxu0 0.0
    %1131 = vmatpush.msra.mxu0 %v1010
    %1132 = vmatmul.f32.gmra.mxu0 %v1114
    %v1133 = vpop.f32.mrf.mxu0
    %v1134 = vadd.f32 0.0, %v1133
    %1135 = vdwg.mxu0
    %v1137 = vperm.slane %v165, 0
    %1139 = vmatpush.msra.mxu0 0.0
    %1140 = vmatpush.msra.mxu0 0.0
    %1141 = vmatpush.msra.mxu0 0.0
    %1142 = vmatpush.msra.mxu0 0.0
    %1143 = vmatpush.msra.mxu0 0.0
    %1144 = vmatpush.msra.mxu0 0.0
    %1145 = vmatpush.msra.mxu0 0.0
    %1146 = vmatpush.msra.mxu0 0.0
    %1147 = vmatpush.msra.mxu0 0.0
    %1148 = vmatpush.msra.mxu0 0.0
    %1149 = vmatpush.msra.mxu0 0.0
    %1150 = vmatpush.msra.mxu0 0.0
    %1151 = vmatpush.msra.mxu0 %v161
    %1152 = vmatpush.msra.mxu0 %v160
    %1153 = vmatpush.msra.mxu0 %v159
    %1154 = vmatpush.msra.mxu0 %v158
    %1155 = vmatmul.f32.gmra.mxu0 %v932
    %v1156 = vpop.f32.mrf.mxu0
    %v1157 = vadd.f32 %v1137, %v1156
    %1158 = vmatmul.f32.gmra.mxu0 %v935
    %v1159 = vpop.f32.mrf.mxu0
    %v1160 = vadd.f32 %v1137, %v1159
    %1161 = vdwg.mxu0
    %v1163 = vperm.slane %v185, 0
    %1165 = vmatpush.msra.mxu0 0.0
    %1166 = vmatpush.msra.mxu0 0.0
    %1167 = vmatpush.msra.mxu0 0.0
    %1168 = vmatpush.msra.mxu0 0.0
    %1169 = vmatpush.msra.mxu0 0.0
    %1170 = vmatpush.msra.mxu0 0.0
    %1171 = vmatpush.msra.mxu0 0.0
    %1172 = vmatpush.msra.mxu0 0.0
    %1173 = vmatpush.msra.mxu0 0.0
    %1174 = vmatpush.msra.mxu0 0.0
    %1175 = vmatpush.msra.mxu0 0.0
    %1176 = vmatpush.msra.mxu0 0.0
    %1177 = vmatpush.msra.mxu0 %v181
    %1178 = vmatpush.msra.mxu0 %v180
    %1179 = vmatpush.msra.mxu0 %v179
    %1180 = vmatpush.msra.mxu0 %v178
    %1181 = vmatmul.f32.gmra.mxu0 %v932
    %v1182 = vpop.f32.mrf.mxu0
    %v1183 = vadd.f32 %v1163, %v1182
    %1184 = vmatmul.f32.gmra.mxu0 %v935
    %v1185 = vpop.f32.mrf.mxu0
    %v1186 = vadd.f32 %v1163, %v1185
    %1187 = vdwg.mxu0
    %v1189 = vperm.slane %v205, 0
    %1191 = vmatpush.msra.mxu0 0.0
    %1192 = vmatpush.msra.mxu0 0.0
    %1193 = vmatpush.msra.mxu0 0.0
    %1194 = vmatpush.msra.mxu0 0.0
    %1195 = vmatpush.msra.mxu0 0.0
    %1196 = vmatpush.msra.mxu0 0.0
    %1197 = vmatpush.msra.mxu0 0.0
    %1198 = vmatpush.msra.mxu0 0.0
    %1199 = vmatpush.msra.mxu0 0.0
    %1200 = vmatpush.msra.mxu0 0.0
    %1201 = vmatpush.msra.mxu0 0.0
    %1202 = vmatpush.msra.mxu0 0.0
    %1203 = vmatpush.msra.mxu0 %v201
    %1204 = vmatpush.msra.mxu0 %v200
    %1205 = vmatpush.msra.mxu0 %v199
    %1206 = vmatpush.msra.mxu0 %v198
    %1207 = vmatmul.f32.gmra.mxu0 %v932
    %v1208 = vpop.f32.mrf.mxu0
    %v1209 = vadd.f32 %v1189, %v1208
    %1210 = vmatmul.f32.gmra.mxu0 %v935
    %v1211 = vpop.f32.mrf.mxu0
    %v1212 = vadd.f32 %v1189, %v1211
    %1213 = vdwg.mxu0
    %v1215 = vsel %vm336, %v1157, 0
    %v1218 = vsel %vm336, %v1183, 0
    %1220 = vmatpush.xpose.msra.mxu0 0.0
    %1221 = vmatpush.xpose.msra.mxu0 0.0
    %1222 = vmatpush.xpose.msra.mxu0 0.0
    %1223 = vmatpush.xpose.msra.mxu0 0.0
    %1224 = vmatpush.xpose.msra.mxu0 0.0
    %1225 = vmatpush.xpose.msra.mxu0 0.0
    %1226 = vmatpush.xpose.msra.mxu0 0.0
    %1227 = vmatpush.xpose.msra.mxu0 0.0
    %1228 = vmatpush.xpose.msra.mxu0 0.0
    %1229 = vmatpush.xpose.msra.mxu0 0.0
    %1230 = vmatpush.xpose.msra.mxu0 0.0
    %1231 = vmatpush.xpose.msra.mxu0 0.0
    %1232 = vmatpush.xpose.msra.mxu0 0.0
    %1233 = vmatpush.xpose.msra.mxu0 0.0
    %1234 = vmatpush.xpose.msra.mxu0 0.0
    %1235 = vmatpush.xpose.msra.mxu0 %v1218
    %1236 = vmatmul.f32.gmra.mxu0 %v1215
    %v1237 = vpop.f32.mrf.mxu0
    %v1238 = vadd.f32 0.0, %v1237
    %1239 = vdwg.mxu0
    %v1240 = vmul.f32 %v1238, 0.25
    %v1241 = vadd.f32 %v1240, %v365
    %v1242 = vsel %vm368, %v1241, -inf
    %1243 = vmax.xlane.f32.xlu0 %v1242
    %v1244 = vpop.xlane.xlu0 %1243
    %v1245 = vsub.f32 %v1241, %v1244
    %v1246 = vmul.f32 %v1245, 1.442695
    %v1247 = vpow.pop %v1246
    %v1248 = vsel %vm368, %v1247, 0.0
    %1249 = vadd.xlane.f32.xlu0 %v1248
    %v1250 = vpop.xlane.xlu0 %1249
    %v1251 = vrcp.pop %v1250
    %v1252 = vmul.f32 %v1247, %v1251
    %v1254 = vsel %vm368, %v1252, 0
    %1256 = vmatpush.msra.mxu0 0.0
    %1257 = vmatpush.msra.mxu0 0.0
    %1258 = vmatpush.msra.mxu0 0.0
    %1259 = vmatpush.msra.mxu0 0.0
    %1260 = vmatpush.msra.mxu0 0.0
    %1261 = vmatpush.msra.mxu0 0.0
    %1262 = vmatpush.msra.mxu0 0.0
    %1263 = vmatpush.msra.mxu0 0.0
    %1264 = vmatpush.msra.mxu0 0.0
    %1265 = vmatpush.msra.mxu0 0.0
    %1266 = vmatpush.msra.mxu0 0.0
    %1267 = vmatpush.msra.mxu0 0.0
    %1268 = vmatpush.msra.mxu0 0.0
    %1269 = vmatpush.msra.mxu0 0.0
    %1270 = vmatpush.msra.mxu0 0.0
    %1271 = vmatpush.msra.mxu0 %v1209
    %1272 = vmatmul.f32.gmra.mxu0 %v1254
    %v1273 = vpop.f32.mrf.mxu0
    %v1274 = vadd.f32 0.0, %v1273
    %1275 = vdwg.mxu0
    %v1277 = vsel %vm336, %v1160, 0
    %v1280 = vsel %vm336, %v1186, 0
    %1282 = vmatpush.xpose.msra.mxu0 0.0
    %1283 = vmatpush.xpose.msra.mxu0 0.0
    %1284 = vmatpush.xpose.msra.mxu0 0.0
    %1285 = vmatpush.xpose.msra.mxu0 0.0
    %1286 = vmatpush.xpose.msra.mxu0 0.0
    %1287 = vmatpush.xpose.msra.mxu0 0.0
    %1288 = vmatpush.xpose.msra.mxu0 0.0
    %1289 = vmatpush.xpose.msra.mxu0 0.0
    %1290 = vmatpush.xpose.msra.mxu0 0.0
    %1291 = vmatpush.xpose.msra.mxu0 0.0
    %1292 = vmatpush.xpose.msra.mxu0 0.0
    %1293 = vmatpush.xpose.msra.mxu0 0.0
    %1294 = vmatpush.xpose.msra.mxu0 0.0
    %1295 = vmatpush.xpose.msra.mxu0 0.0
    %1296 = vmatpush.xpose.msra.mxu0 0.0
    %1297 = vmatpush.xpose.msra.mxu0 %v1280
    %1298 = vmatmul.f32.gmra.mxu0 %v1277
    %v1299 = vpop.f32.mrf.mxu0
    %v1300 = vadd.f32 0.0, %v1299
    %1301 = vdwg.mxu0
    %v1302 = vmul.f32 %v1300, 0.25
    %v1303 = vadd.f32 %v1302, %v431
    %v1304 = vsel %vm368, %v1303, -inf
    %1305 = vmax.xlane.f32.xlu0 %v1304
    %v1306 = vpop.xlane.xlu0 %1305
    %v1307 = vsub.f32 %v1303, %v1306
    %v1308 = vmul.f32 %v1307, 1.442695
    %v1309 = vpow.pop %v1308
    %v1310 = vsel %vm368, %v1309, 0.0
    %1311 = vadd.xlane.f32.xlu0 %v1310
    %v1312 = vpop.xlane.xlu0 %1311
    %v1313 = vrcp.pop %v1312
    %v1314 = vmul.f32 %v1309, %v1313
    %v1316 = vsel %vm368, %v1314, 0
    %1318 = vmatpush.msra.mxu0 0.0
    %1319 = vmatpush.msra.mxu0 0.0
    %1320 = vmatpush.msra.mxu0 0.0
    %1321 = vmatpush.msra.mxu0 0.0
    %1322 = vmatpush.msra.mxu0 0.0
    %1323 = vmatpush.msra.mxu0 0.0
    %1324 = vmatpush.msra.mxu0 0.0
    %1325 = vmatpush.msra.mxu0 0.0
    %1326 = vmatpush.msra.mxu0 0.0
    %1327 = vmatpush.msra.mxu0 0.0
    %1328 = vmatpush.msra.mxu0 0.0
    %1329 = vmatpush.msra.mxu0 0.0
    %1330 = vmatpush.msra.mxu0 0.0
    %1331 = vmatpush.msra.mxu0 0.0
    %1332 = vmatpush.msra.mxu0 0.0
    %1333 = vmatpush.msra.mxu0 %v1212
    %1334 = vmatmul.f32.gmra.mxu0 %v1316
    %v1335 = vpop.f32.mrf.mxu0
    %v1336 = vadd.f32 0.0, %v1335
    %1337 = vdwg.mxu0
    %v1339 = vsel %vm336, %v1274, 0
    %v1342 = vsel %vm336, %v1336, 0
    %1344 = vmatpush.msra.mxu0 0.0
    %1345 = vmatpush.msra.mxu0 0.0
    %1346 = vmatpush.msra.mxu0 0.0
    %1347 = vmatpush.msra.mxu0 0.0
    %1348 = vmatpush.msra.mxu0 0.0
    %1349 = vmatpush.msra.mxu0 0.0
    %1350 = vmatpush.msra.mxu0 0.0
    %1351 = vmatpush.msra.mxu0 0.0
    %1352 = vmatpush.msra.mxu0 0.0
    %1353 = vmatpush.msra.mxu0 0.0
    %1354 = vmatpush.msra.mxu0 0.0
    %1355 = vmatpush.msra.mxu0 0.0
    %1356 = vmatpush.msra.mxu0 0.0
    %1357 = vmatpush.msra.mxu0 0.0
    %1358 = vmatpush.msra.mxu0 %v213
    %1359 = vmatpush.msra.mxu0 %v212
    %1360 = vmatmul.f32.gmra.mxu0 %v1339
    %v1361 = vpop.f32.mrf.mxu0
    %v1362 = vadd.f32 0.0, %v1361
    %1363 = vmatmul.f32.gmra.mxu0 %v1342
    %v1364 = vpop.f32.mrf.mxu0
    %v1365 = vadd.f32 0.0, %v1364
    %1366 = vdwg.mxu0
    %v1368 = vsel %vm336, %v1072, 0
    %v1371 = vsel %vm336, %v1134, 0
    %1373 = vmatpush.msra.mxu0 0.0
    %1374 = vmatpush.msra.mxu0 0.0
    %1375 = vmatpush.msra.mxu0 0.0
    %1376 = vmatpush.msra.mxu0 0.0
    %1377 = vmatpush.msra.mxu0 0.0
    %1378 = vmatpush.msra.mxu0 0.0
    %1379 = vmatpush.msra.mxu0 0.0
    %1380 = vmatpush.msra.mxu0 0.0
    %1381 = vmatpush.msra.mxu0 0.0
    %1382 = vmatpush.msra.mxu0 0.0
    %1383 = vmatpush.msra.mxu0 0.0
    %1384 = vmatpush.msra.mxu0 0.0
    %1385 = vmatpush.msra.mxu0 0.0
    %1386 = vmatpush.msra.mxu0 0.0
    %1387 = vmatpush.msra.mxu0 %v211
    %1388 = vmatpush.msra.mxu0 %v210
    %1389 = vmatmul.f32.gmra.mxu0 %v1368
    %v1390 = vpop.f32.mrf.mxu0
    %v1391 = vadd.f32 %v1362, %v1390
    %1392 = vmatmul.f32.gmra.mxu0 %v1371
    %v1393 = vpop.f32.mrf.mxu0
    %v1394 = vadd.f32 %v1365, %v1393
    %1395 = vdwg.mxu0
    %v1397 = vperm.slane %v215, 0
    %v1399 = vadd.f32 %v1391, %v1397
    %v1400 = vadd.f32 %v1394, %v1397
    %v1401 = vadd.f32 %v926, %v1399
    %v1402 = vadd.f32 %v927, %v1400
    %v1403 = vsel %vm82, %v1401, 0.0
    %1404 = vadd.xlane.f32.xlu0 %v1403
    %v1405 = vpop.xlane.xlu0 %1404
    %v1406 = vsel %vm82, %v1402, 0.0
    %1407 = vadd.xlane.f32.xlu0 %v1406
    %v1408 = vpop.xlane.xlu0 %1407
    %v1409 = vmul.f32 %v1405, %v95
    %v1410 = vmul.f32 %v1408, %v95
    %v1411 = vsub.f32 %v1401, %v1409
    %v1412 = vsub.f32 %v1402, %v1410
    %v1413 = vmul.f32 %v1411, %v1411
    %v1414 = vmul.f32 %v1412, %v1412
    %v1415 = vsel %vm82, %v1413, 0.0
    %1416 = vadd.xlane.f32.xlu0 %v1415
    %v1417 = vpop.xlane.xlu0 %1416
    %v1418 = vsel %vm82, %v1414, 0.0
    %1419 = vadd.xlane.f32.xlu0 %v1418
    %v1420 = vpop.xlane.xlu0 %1419
    %v1421 = vmul.f32 %v1417, %v95
    %v1422 = vmul.f32 %v1420, %v95
    %v1423 = vadd.f32 %v1421, 1e-12
    %v1424 = vadd.f32 %v1422, 1e-12
    %v1425 = vrsqrt.pop %v1423
    %v1426 = vmul.f32 %v1425, %v1423
    %v1427 = vmul.f32 %v1426, %v1425
    %v1428 = vmul.f32 0.5, %v1427
    %v1429 = vsub.f32 1.5, %v1428
    %v1430 = vmul.f32 %v1425, %v1429
    %vm1431 = vweird.f32 %v1423
    %vm1432 = vweird.f32 %v1425
    %vm1433 = vmor %vm1431, %vm1432
    %v1434 = vsel %vm1433, %v1425, %v1430
    %v1435 = vrsqrt.pop %v1424
    %v1436 = vmul.f32 %v1435, %v1424
    %v1437 = vmul.f32 %v1436, %v1435
    %v1438 = vmul.f32 0.5, %v1437
    %v1439 = vsub.f32 1.5, %v1438
    %v1440 = vmul.f32 %v1435, %v1439
    %vm1441 = vweird.f32 %v1424
    %vm1442 = vweird.f32 %v1435
    %vm1443 = vmor %vm1441, %vm1442
    %v1444 = vsel %vm1443, %v1435, %v1440
    %v1445 = vmul.f32 %v1411, %v1434
    %v1446 = vmul.f32 %v1412, %v1444
    %v1448 = vperm.slane %v217, 0
    %v1450 = vmul.f32 %v1445, %v1448
    %v1451 = vmul.f32 %v1446, %v1448
    %v1453 = vperm.slane %v219, 0
    %v1455 = vadd.f32 %v1450, %v1453
    %v1456 = vadd.f32 %v1451, %v1453
    %v1458 = vperm.slane %v229, 0
    %v1461 = vsel %vm82, %v1455, 0
    %v1464 = vsel %vm82, %v1456, 0
    %1466 = vmatpush.msra.mxu0 0.0
    %1467 = vmatpush.msra.mxu0 0.0
    %1468 = vmatpush.msra.mxu0 0.0
    %1469 = vmatpush.msra.mxu0 0.0
    %1470 = vmatpush.msra.mxu0 0.0
    %1471 = vmatpush.msra.mxu0 0.0
    %1472 = vmatpush.msra.mxu0 0.0
    %1473 = vmatpush.msra.mxu0 0.0
    %1474 = vmatpush.msra.mxu0 0.0
    %1475 = vmatpush.msra.mxu0 0.0
    %1476 = vmatpush.msra.mxu0 0.0
    %1477 = vmatpush.msra.mxu0 0.0
    %1478 = vmatpush.msra.mxu0 %v227
    %1479 = vmatpush.msra.mxu0 %v226
    %1480 = vmatpush.msra.mxu0 %v225
    %1481 = vmatpush.msra.mxu0 %v224
    %1482 = vmatmul.f32.gmra.mxu0 %v1461
    %v1483 = vpop.f32.mrf.mxu0
    %v1484 = vadd.f32 %v1458, %v1483
    %1485 = vmatmul.f32.gmra.mxu0 %v1464
    %v1486 = vpop.f32.mrf.mxu0
    %v1487 = vadd.f32 %v1458, %v1486
    %1488 = vdwg.mxu0
    %v1489 = vmul.f32 %v1484, %v1484
    %v1490 = vmul.f32 %v1487, %v1487
    %v1491 = vmul.f32 %v1484, %v1489
    %v1492 = vmul.f32 %v1487, %v1490
    %v1493 = vmul.f32 %v1491, 0.044715
    %v1494 = vmul.f32 %v1492, 0.044715
    %v1495 = vadd.f32 %v1484, %v1493
    %v1496 = vadd.f32 %v1487, %v1494
    %v1497 = vmul.f32 %v1495, 0.7978846
    %v1498 = vmul.f32 %v1496, 0.7978846
    %v1499 = vtanh.pop %v1497
    %v1500 = vtanh.pop %v1498
    %v1501 = vadd.f32 %v1499, 1.0
    %v1502 = vadd.f32 %v1500, 1.0
    %v1503 = vmul.f32 %v1501, 0.5
    %v1504 = vmul.f32 %v1502, 0.5
    %v1505 = vmul.f32 %v1484, %v1503
    %v1506 = vmul.f32 %v1487, %v1504
    %v1508 = vperm.slane %v247, 0
    %v1511 = vsel %vm842, %v1505, 0
    %v1514 = vsel %vm842, %v1506, 0
    %1516 = vmatpush.msra.mxu0 0.0
    %1517 = vmatpush.msra.mxu0 0.0
    %1518 = vmatpush.msra.mxu0 0.0
    %1519 = vmatpush.msra.mxu0 0.0
    %1520 = vmatpush.msra.mxu0 0.0
    %1521 = vmatpush.msra.mxu0 0.0
    %1522 = vmatpush.msra.mxu0 0.0
    %1523 = vmatpush.msra.mxu0 0.0
    %1524 = vmatpush.msra.mxu0 %v245
    %1525 = vmatpush.msra.mxu0 %v244
    %1526 = vmatpush.msra.mxu0 %v243
    %1527 = vmatpush.msra.mxu0 %v242
    %1528 = vmatpush.msra.mxu0 %v241
    %1529 = vmatpush.msra.mxu0 %v240
    %1530 = vmatpush.msra.mxu0 %v239
    %1531 = vmatpush.msra.mxu0 %v238
    %1532 = vmatmul.f32.gmra.mxu0 %v1511
    %v1533 = vpop.f32.mrf.mxu0
    %v1534 = vadd.f32 %v1508, %v1533
    %1535 = vmatmul.f32.gmra.mxu0 %v1514
    %v1536 = vpop.f32.mrf.mxu0
    %v1537 = vadd.f32 %v1508, %v1536
    %1538 = vdwg.mxu0
    %v1539 = vadd.f32 %v1455, %v1534
    %v1540 = vadd.f32 %v1456, %v1537
    %v1541 = vsel %vm82, %v1539, 0.0
    %1542 = vadd.xlane.f32.xlu0 %v1541
    %v1543 = vpop.xlane.xlu0 %1542
    %v1544 = vsel %vm82, %v1540, 0.0
    %1545 = vadd.xlane.f32.xlu0 %v1544
    %v1546 = vpop.xlane.xlu0 %1545
    %v1547 = vmul.f32 %v1543, %v95
    %v1548 = vmul.f32 %v1546, %v95
    %v1549 = vsub.f32 %v1539, %v1547
    %v1550 = vsub.f32 %v1540, %v1548
    %v1551 = vmul.f32 %v1549, %v1549
    %v1552 = vmul.f32 %v1550, %v1550
    %v1553 = vsel %vm82, %v1551, 0.0
    %1554 = vadd.xlane.f32.xlu0 %v1553
    %v1555 = vpop.xlane.xlu0 %1554
    %v1556 = vsel %vm82, %v1552, 0.0
    %1557 = vadd.xlane.f32.xlu0 %v1556
    %v1558 = vpop.xlane.xlu0 %1557
    %v1559 = vmul.f32 %v1555, %v95
    %v1560 = vmul.f32 %v1558, %v95
    %v1561 = vadd.f32 %v1559, 1e-12
    %v1562 = vadd.f32 %v1560, 1e-12
    %v1563 = vrsqrt.pop %v1561
    %v1564 = vmul.f32 %v1563, %v1561
    %v1565 = vmul.f32 %v1564, %v1563
    %v1566 = vmul.f32 0.5, %v1565
    %v1567 = vsub.f32 1.5, %v1566
    %v1568 = vmul.f32 %v1563, %v1567
    %vm1569 = vweird.f32 %v1561
    %vm1570 = vweird.f32 %v1563
    %vm1571 = vmor %vm1569, %vm1570
    %v1572 = vsel %vm1571, %v1563, %v1568
    %v1573 = vrsqrt.pop %v1562
    %v1574 = vmul.f32 %v1573, %v1562
    %v1575 = vmul.f32 %v1574, %v1573
    %v1576 = vmul.f32 0.5, %v1575
    %v1577 = vsub.f32 1.5, %v1576
    %v1578 = vmul.f32 %v1573, %v1577
    %vm1579 = vweird.f32 %v1562
    %vm1580 = vweird.f32 %v1573
    %vm1581 = vmor %vm1579, %vm1580
    %v1582 = vsel %vm1581, %v1573, %v1578
    %v1583 = vmul.f32 %v1549, %v1572
    %v1584 = vmul.f32 %v1550, %v1582
    %v1586 = vperm.slane %v249, 0
    %v1588 = vmul.f32 %v1583, %v1586
    %v1589 = vmul.f32 %v1584, %v1586
    %v1591 = vperm.slane %v251, 0
    %v1593 = vadd.f32 %v1588, %v1591
    %v1594 = vadd.f32 %v1589, %v1591
    %v1595 = vld [vmem:[%s20] sm:$0xff]
    %v1596 = vld [vmem:[%s20 + $0x8] sm:$0xff]
    %v1597 = vld [vmem:[%s20 + $0x10] sm:$0xff]
    %v1598 = vld [vmem:[%s20 + $0x18] sm:$0xff]
    %v1599 = vld [vmem:[%s21] sm:$0x1]
    %v1601 = vperm.slane %v1599, 0
    %v1604 = vsel %vm82, %v1593, 0
    %v1607 = vsel %vm82, %v1594, 0
    %1609 = vmatpush.msra.mxu0 0.0
    %1610 = vmatpush.msra.mxu0 0.0
    %1611 = vmatpush.msra.mxu0 0.0
    %1612 = vmatpush.msra.mxu0 0.0
    %1613 = vmatpush.msra.mxu0 0.0
    %1614 = vmatpush.msra.mxu0 0.0
    %1615 = vmatpush.msra.mxu0 0.0
    %1616 = vmatpush.msra.mxu0 0.0
    %1617 = vmatpush.msra.mxu0 0.0
    %1618 = vmatpush.msra.mxu0 0.0
    %1619 = vmatpush.msra.mxu0 0.0
    %1620 = vmatpush.msra.mxu0 0.0
    %1621 = vmatpush.msra.mxu0 %v1598
    %1622 = vmatpush.msra.mxu0 %v1597
    %1623 = vmatpush.msra.mxu0 %v1596
    %1624 = vmatpush.msra.mxu0 %v1595
    %1625 = vmatmul.f32.gmra.mxu0 %v1604
    %v1626 = vpop.f32.mrf.mxu0
    %v1627 = vadd.f32 %v1601, %v1626
    %1628 = vmatmul.f32.gmra.mxu0 %v1607
    %v1629 = vpop.f32.mrf.mxu0
    %v1630 = vadd.f32 %v1601, %v1629
    %1631 = vdwg.mxu0
    %v1632 = vtanh.pop %v1627
    %v1633 = vtanh.pop %v1630
    %v1634 = vld [vmem:[%s22] sm:$0xff]
    %v1635 = vld [vmem:[%s22 + $0x8] sm:$0xff]
    %v1636 = vld [vmem:[%s22 + $0x10] sm:$0xff]
    %v1637 = vld [vmem:[%s22 + $0x18] sm:$0xff]
    %v1638 = vld [vmem:[%s23] sm:$0x1]
    %v1640 = vperm.slane %v1638, 0
    %v1643 = vsel %vm82, %v1632, 0
    %v1646 = vsel %vm82, %v1633, 0
    %1648 = vmatpush.msra.mxu0 0.0
    %1649 = vmatpush.msra.mxu0 0.0
    %1650 = vmatpush.msra.mxu0 0.0
    %1651 = vmatpush.msra.mxu0 0.0
    %1652 = vmatpush.msra.mxu0 0.0
    %1653 = vmatpush.msra.mxu0 0.0
    %1654 = vmatpush.msra.mxu0 0.0
    %1655 = vmatpush.msra.mxu0 0.0
    %1656 = vmatpush.msra.mxu0 0.0
    %1657 = vmatpush.msra.mxu0 0.0
    %1658 = vmatpush.msra.mxu0 0.0
    %1659 = vmatpush.msra.mxu0 0.0
    %1660 = vmatpush.msra.mxu0 %v1637
    %1661 = vmatpush.msra.mxu0 %v1636
    %1662 = vmatpush.msra.mxu0 %v1635
    %1663 = vmatpush.msra.mxu0 %v1634
    %1664 = vmatmul.f32.gmra.mxu0 %v1643
    %v1665 = vpop.f32.mrf.mxu0
    %v1666 = vadd.f32 %v1640, %v1665
    %1667 = vmatmul.f32.gmra.mxu0 %v1646
    %v1668 = vpop.f32.mrf.mxu0
    %v1669 = vadd.f32 %v1640, %v1668
    %1670 = vdwg.mxu0
    %1671 = vst [vmem:[#allocation2] sm:$0x1] %v1666
    %1672 = vst [vmem:[#allocation2 + $0x1] sm:$0x1] %v1669
    // Predicated region
    $region98: #{_lambda_.1} parent=1 // pred_check
      _
    $region99: #{_lambda_.1} parent=1 // pred_check_branch
      %1674 = sbr.rel (0) target = $region101
    $region100: #{_lambda_.1} parent=1 // pred_region
      %1676 = vsyncadd [#allocation3], 0
      %s1678 = sshll.u32 [#allocation2], 4
      %s1679 = int_to_ptr.vmem [resolvable:$true] %s1678
      %s1680 = sshll.u32 %s24, 4
      %s1681 = int_to_ptr.hbm [resolvable:$true] %s1680
      %1683 = dma.vmem_to_hbm [thread:$0]  %s1679, 32, %s1681, [#allocation3]
    $region101: #{_lambda_.1} parent=1 // pred_fallthru
      _
    // Predicated region
    $region102: #{_lambda_.1} parent=1 // pred_check
      _
    $region103: #{_lambda_.1} parent=1 // pred_check_branch
      %1685 = sbr.rel (0) target = $region105
    $region104: #{_lambda_.1} parent=1 // pred_region
      %1687 = dma.done [#allocation3], 32
    $region105: #{_lambda_.1} parent=1 // pred_fallthru
      _
    %1688 = vsyncpa [#allocation3], 1

</llo_original>
